<compile_context>
chip_gen: v6e
topology: v6e:2x2x1
jax: 0.10.0
libtpu: 0.0.40
codegen_flags: <defaults>
</compile_context>

<pallas_src>
import jax
import jax.numpy as jnp
from jax.experimental import pallas as pl
from jax.experimental.pallas import tpu as pltpu


# ----------------------------- kernel ---------------------------------------


def gru_cell_kernel(x_ref, h_ref, hcol_ref, wx_ref, wh_ref, bx_ref, bh_ref,
                    out_ref):
    """One (tb, tn) output tile of the GRU cell.

    x_ref   : (tb, I)        input rows
    h_ref   : (tb, H)        full hidden rows (K of the h-matmul)
    hcol_ref: (tb, tn)       hidden columns of this tile (for the blend)
    wx_ref  : (I, 3*tn)      gate-blocked x2h weights  [reset | update | new]
    wh_ref  : (H, 3*tn)      gate-blocked h2h weights  [reset | update | new]
    bx_ref  : (1, 3*tn)      x2h bias (f32)
    bh_ref  : (1, 3*tn)      h2h bias (f32)
    out_ref : (tb, tn)       hy tile
    """
    tn = out_ref.shape[1]
    wdt = wx_ref.dtype  # matmul compute dtype (f32 or bf16)

    x = x_ref[...].astype(wdt)
    h = h_ref[...].astype(wdt)

    # Two fused (B,3*tn) matmuls instead of six per-gate ones; f32 accumulate.
    xt = jnp.dot(x, wx_ref[...], preferred_element_type=jnp.float32) + bx_ref[...]
    ht = jnp.dot(h, wh_ref[...], preferred_element_type=jnp.float32) + bh_ref[...]

    # Gate slices are lane-aligned (tn is a multiple of 128, or 3*tn == full).
    x_r, x_u, x_n = xt[:, :tn], xt[:, tn:2 * tn], xt[:, 2 * tn:]
    h_r, h_u, h_n = ht[:, :tn], ht[:, tn:2 * tn], ht[:, 2 * tn:]

    # Gate math stays f32 (v5e has no bf16 VPU/EUP).
    reset_gate = jax.nn.sigmoid(x_r + h_r)
    update_gate = jax.nn.sigmoid(x_u + h_u)
    new_gate = jnp.tanh(x_n + reset_gate * h_n)

    h_col = hcol_ref[...].astype(jnp.float32)
    hy = update_gate * h_col + (1.0 - update_gate) * new_gate
    out_ref[...] = hy.astype(out_ref.dtype)


# --------------------------- wrapper / packing -------------------------------


def _pick_tile_n(hidden_size):
    """N tile in H-space. Prefer 256 (v6e/v7x MXU geometry), then 128."""
    if hidden_size % 256 == 0:
        return 256
    if hidden_size % 128 == 0:
        return 128
    # Fallback: one (lane-unaligned) block — correct but slower.
    return hidden_size


def _pack_gate_blocked(w_fused, hidden_size, tn):
    """(K, 3H) fused weight [r|u|n] -> (H//tn, K, 3*tn) gate-blocked weight."""
    K = w_fused.shape[0]
    nj = hidden_size // tn
    w = w_fused.reshape(K, 3, nj, tn)         # [k, gate, j, t]
    w = jnp.transpose(w, (2, 0, 1, 3))        # [j, k, gate, t]
    return w.reshape(nj, K, 3 * tn)


def _pack_bias(b_fused, hidden_size, tn):
    """(3H,) fused bias [r|u|n] -> (H//tn, 1, 3*tn)."""
    nj = hidden_size // tn
    b = b_fused.reshape(3, nj, tn)
    b = jnp.transpose(b, (1, 0, 2))
    return b.reshape(nj, 1, 3 * tn)


def gru_cell_pallas(x, hx, w_x2h, b_x2h, w_h2h, b_h2h, *, weight_dtype=None):
    """GRU cell forward.

    x: (B, I), hx: (B, H) or None, PyTorch-layout params:
      w_x2h: (3H, I), b_x2h: (3H,), w_h2h: (3H, H), b_h2h: (3H,)
    weight_dtype: optional matmul dtype (e.g. jnp.bfloat16) for the weights
      and activations fed to the MXU; gate math stays f32.
    """
    B, I = x.shape
    H = w_x2h.shape[0] // 3
    if hx is None:
        hx = jnp.zeros((B, H), x.dtype)

    tn = _pick_tile_n(H)
    nj = H // tn
    tb = B if B <= 128 else (128 if B % 128 == 0 else B)
    nb = B // tb

    wdt = w_x2h.dtype if weight_dtype is None else weight_dtype

    # Wrapper-side layout plumbing (no compute): fuse + gate-block the weights.
    # y = x @ W.T in PyTorch  =>  fused weight is W.T with columns [r | u | n].
    wx = _pack_gate_blocked(w_x2h.T, H, tn).astype(wdt)   # (nj, I, 3*tn)
    wh = _pack_gate_blocked(w_h2h.T, H, tn).astype(wdt)   # (nj, H, 3*tn)
    bx = _pack_bias(b_x2h, H, tn).astype(jnp.float32)     # (nj, 1, 3*tn)
    bh = _pack_bias(b_h2h, H, tn).astype(jnp.float32)     # (nj, 1, 3*tn)

    # VMEM budget: all blocks double-buffered + headroom, clamped for v7x 64MiB.
    # TODO(synk): for very large I/H, add a K-reduction grid axis + f32
    # accumulator instead of keeping the full K extent resident per block.
    isz = jnp.dtype(x.dtype).itemsize
    wsz = jnp.dtype(wdt).itemsize
    block_bytes = (tb * I * isz + tb * H * isz + tb * tn * isz          # x, h, hcol
                   + I * 3 * tn * wsz + H * 3 * tn * wsz                # wx, wh
                   + 2 * 3 * tn * 4                                     # biases
                   + tb * tn * isz)                                     # out
    vmem_limit = int(min(max(2 * block_bytes + (4 << 20), 32 << 20), 64 << 20))

    grid_spec = pltpu.PrefetchScalarGridSpec(
        num_scalar_prefetch=0,
        grid=(nb, nj),
        in_specs=[
            pl.BlockSpec((tb, I), lambda i, j: (i, 0)),            # x rows
            pl.BlockSpec((tb, H), lambda i, j: (i, 0)),            # h rows (matmul K)
            pl.BlockSpec((tb, tn), lambda i, j: (i, j)),           # h cols (blend)
            pl.BlockSpec((None, I, 3 * tn), lambda i, j: (j, 0, 0)),   # Wx block
            pl.BlockSpec((None, H, 3 * tn), lambda i, j: (j, 0, 0)),   # Wh block
            pl.BlockSpec((None, 1, 3 * tn), lambda i, j: (j, 0, 0)),   # bx block
            pl.BlockSpec((None, 1, 3 * tn), lambda i, j: (j, 0, 0)),   # bh block
        ],
        out_specs=pl.BlockSpec((tb, tn), lambda i, j: (i, j)),
    )

    return pl.pallas_call(
        gru_cell_kernel,
        out_shape=jax.ShapeDtypeStruct((B, H), x.dtype),
        grid_spec=grid_spec,
        compiler_params=pltpu.CompilerParams(
            dimension_semantics=("parallel", "parallel"),
            vmem_limit_bytes=vmem_limit,
        ),
    )(x, hx, hx, wx, wh, bx, bh)


# ------------------------------ reference ------------------------------------


def gru_cell_ref(x, hx, w_x2h, b_x2h, w_h2h, b_h2h):
    """Pure-JAX reference matching the PyTorch module exactly."""
    H = w_x2h.shape[0] // 3
    if hx is None:
        hx = jnp.zeros((x.shape[0], H), x.dtype)
    x_t = x @ w_x2h.T + b_x2h
    h_t = hx @ w_h2h.T + b_h2h
    x_r, x_u, x_n = x_t[:, :H], x_t[:, H:2 * H], x_t[:, 2 * H:]
    h_r, h_u, h_n = h_t[:, :H], h_t[:, H:2 * H], h_t[:, 2 * H:]
    r = jax.nn.sigmoid(x_r + h_r)
    u = jax.nn.sigmoid(x_u + h_u)
    n = jnp.tanh(x_n + r * h_n)
    return u * hx + (1.0 - u) * n


def make_params(key, input_size, hidden_size, dtype=jnp.float32):
    """nn.Linear-style init: U(-1/sqrt(fan_in), 1/sqrt(fan_in)), PyTorch layout."""
    k1, k2, k3, k4 = jax.random.split(key, 4)
    bnd_x = 1.0 / jnp.sqrt(jnp.float32(input_size))
    bnd_h = 1.0 / jnp.sqrt(jnp.float32(hidden_size))
    w_x2h = jax.random.uniform(k1, (3 * hidden_size, input_size), dtype, -bnd_x, bnd_x)
    b_x2h = jax.random.uniform(k2, (3 * hidden_size,), dtype, -bnd_x, bnd_x)
    w_h2h = jax.random.uniform(k3, (3 * hidden_size, hidden_size), dtype, -bnd_h, bnd_h)
    b_h2h = jax.random.uniform(k4, (3 * hidden_size,), dtype, -bnd_h, bnd_h)
    return w_x2h, b_x2h, w_h2h, b_h2h


# ------------------------------- main -----------------------------------------


if __name__ == "__main__":
    # Small but lane-dense shapes (H multiple of 128; tn=256 -> grid (1, 2)).
    batch, input_size, hidden_size = 8, 128, 512

    key = jax.random.PRNGKey(0)
    k_param, k_x, k_h = jax.random.split(key, 3)
    w_x2h, b_x2h, w_h2h, b_h2h = make_params(k_param, input_size, hidden_size)
    x = jax.random.normal(k_x, (batch, input_size), dtype=jnp.float32)
    hx = jax.random.normal(k_h, (batch, hidden_size), dtype=jnp.float32)

    hy_ref = gru_cell_ref(x, hx, w_x2h, b_x2h, w_h2h, b_h2h)

    # f32 weights (reference-accuracy path).
    hy = jax.block_until_ready(gru_cell_pallas(x, hx, w_x2h, b_x2h, w_h2h, b_h2h))
    assert hy.shape == (batch, hidden_size)
    assert jnp.allclose(hy, hy_ref, atol=1e-4, rtol=1e-4), "f32 mismatch vs reference"

    # hx=None path (zero initial hidden state), as in the PyTorch module.
    hy0 = jax.block_until_ready(
        gru_cell_pallas(x, None, w_x2h, b_x2h, w_h2h, b_h2h))
    hy0_ref = gru_cell_ref(x, None, w_x2h, b_x2h, w_h2h, b_h2h)
    assert jnp.allclose(hy0, hy0_ref, atol=1e-4, rtol=1e-4), "hx=None mismatch"

    # bf16-weight fast path (halves weight HBM traffic; gate math stays f32).
    hy_bf16 = jax.block_until_ready(
        gru_cell_pallas(x, hx, w_x2h, b_x2h, w_h2h, b_h2h,
                        weight_dtype=jnp.bfloat16))
    assert jnp.allclose(hy_bf16, hy_ref, atol=5e-2, rtol=5e-2), "bf16 mismatch"

    print("KERNEL_OK")
</pallas_src>

<mosaic_0001>
module attributes {stable_mosaic.version = 11 : i64} {
  func.func @gru_cell_kernel(%arg0: i32, %arg1: i32, %arg2: memref<8x128xf32, #tpu.memory_space<vmem>>, %arg3: memref<8x512xf32, #tpu.memory_space<vmem>>, %arg4: memref<8x256xf32, #tpu.memory_space<vmem>>, %arg5: memref<1x128x768xf32, #tpu.memory_space<vmem>>, %arg6: memref<1x512x768xf32, #tpu.memory_space<vmem>>, %arg7: memref<1x1x768xf32, #tpu.memory_space<vmem>>, %arg8: memref<1x1x768xf32, #tpu.memory_space<vmem>>, %arg9: memref<8x256xf32, #tpu.memory_space<vmem>>) attributes {dimension_semantics = [#tpu.dimension_semantics<parallel>, #tpu.dimension_semantics<parallel>], iteration_bounds = array<i64: 1, 2>, scalar_prefetch = 0 : i64, scratch_operands = 0 : i64, tpu.core_type = #tpu.core_type<tc>, window_params = [{transform_indices = @transform_0, window_bounds = array<i64: 8, 128>}, {transform_indices = @transform_1, window_bounds = array<i64: 8, 512>}, {transform_indices = @transform_2, window_bounds = array<i64: 8, 256>}, {transform_indices = @transform_3, window_bounds = array<i64: 1, 128, 768>}, {transform_indices = @transform_4, window_bounds = array<i64: 1, 512, 768>}, {transform_indices = @transform_5, window_bounds = array<i64: 1, 1, 768>}, {transform_indices = @transform_6, window_bounds = array<i64: 1, 1, 768>}, {transform_indices = @transform_7, window_bounds = array<i64: 8, 256>}]} {
    %c0 = arith.constant 0 : index
    %c0_0 = arith.constant 0 : index
    %0 = vector.load %arg2[%c0, %c0_0] : memref<8x128xf32, #tpu.memory_space<vmem>>, vector<8x128xf32>
    %c0_1 = arith.constant 0 : index
    %c0_2 = arith.constant 0 : index
    %1 = vector.load %arg3[%c0_1, %c0_2] : memref<8x512xf32, #tpu.memory_space<vmem>>, vector<8x512xf32>
    %c0_3 = arith.constant 0 : index
    %c0_4 = arith.constant 0 : index
    %c0_5 = arith.constant 0 : index
    %2 = vector.load %arg5[%c0_3, %c0_4, %c0_5] : memref<1x128x768xf32, #tpu.memory_space<vmem>>, vector<1x128x768xf32>
    %3 = vector.shape_cast %2 : vector<1x128x768xf32> to vector<128x768xf32>
    %cst = arith.constant dense<0.000000e+00> : vector<8x768xf32>
    %4 = tpu.matmul %0, %3, %cst {dimension_numbers = #tpu.dot_dimension_numbers<[1], [0], [0], [1], [0, 0, 1, 1], [], []>} : vector<8x128xf32>, vector<128x768xf32>, vector<8x768xf32> -> vector<8x768xf32>
    %c0_6 = arith.constant 0 : index
    %c0_7 = arith.constant 0 : index
    %c0_8 = arith.constant 0 : index
    %5 = vector.load %arg7[%c0_6, %c0_7, %c0_8] : memref<1x1x768xf32, #tpu.memory_space<vmem>>, vector<1x1x768xf32>
    %6 = vector.shape_cast %5 : vector<1x1x768xf32> to vector<1x768xf32>
    %7 = vector.broadcast %6 : vector<1x768xf32> to vector<8x768xf32>
    %8 = arith.addf %4, %7 : vector<8x768xf32>
    %c0_9 = arith.constant 0 : index
    %c0_10 = arith.constant 0 : index
    %c0_11 = arith.constant 0 : index
    %9 = vector.load %arg6[%c0_9, %c0_10, %c0_11] : memref<1x512x768xf32, #tpu.memory_space<vmem>>, vector<1x512x768xf32>
    %10 = vector.shape_cast %9 : vector<1x512x768xf32> to vector<512x768xf32>
    %cst_12 = arith.constant dense<0.000000e+00> : vector<8x768xf32>
    %11 = tpu.matmul %1, %10, %cst_12 {dimension_numbers = #tpu.dot_dimension_numbers<[1], [0], [0], [1], [0, 0, 1, 1], [], []>} : vector<8x512xf32>, vector<512x768xf32>, vector<8x768xf32> -> vector<8x768xf32>
    %c0_13 = arith.constant 0 : index
    %c0_14 = arith.constant 0 : index
    %c0_15 = arith.constant 0 : index
    %12 = vector.load %arg8[%c0_13, %c0_14, %c0_15] : memref<1x1x768xf32, #tpu.memory_space<vmem>>, vector<1x1x768xf32>
    %13 = vector.shape_cast %12 : vector<1x1x768xf32> to vector<1x768xf32>
    %14 = vector.broadcast %13 : vector<1x768xf32> to vector<8x768xf32>
    %15 = arith.addf %11, %14 : vector<8x768xf32>
    %16 = vector.extract_strided_slice %8 {offsets = [0, 0], sizes = [8, 256], strides = [1, 1]} : vector<8x768xf32> to vector<8x256xf32>
    %17 = vector.extract_strided_slice %8 {offsets = [0, 256], sizes = [8, 256], strides = [1, 1]} : vector<8x768xf32> to vector<8x256xf32>
    %18 = vector.extract_strided_slice %8 {offsets = [0, 512], sizes = [8, 256], strides = [1, 1]} : vector<8x768xf32> to vector<8x256xf32>
    %19 = vector.extract_strided_slice %15 {offsets = [0, 0], sizes = [8, 256], strides = [1, 1]} : vector<8x768xf32> to vector<8x256xf32>
    %20 = vector.extract_strided_slice %15 {offsets = [0, 256], sizes = [8, 256], strides = [1, 1]} : vector<8x768xf32> to vector<8x256xf32>
    %21 = vector.extract_strided_slice %15 {offsets = [0, 512], sizes = [8, 256], strides = [1, 1]} : vector<8x768xf32> to vector<8x256xf32>
    %22 = arith.addf %16, %19 : vector<8x256xf32>
    %23 = arith.negf %22 : vector<8x256xf32>
    %24 = math.exp %23 : vector<8x256xf32>
    %cst_16 = arith.constant 1.000000e+00 : f32
    %25 = vector.broadcast %cst_16 : f32 to vector<8x256xf32>
    %26 = arith.addf %25, %24 : vector<8x256xf32>
    %27 = arith.divf %25, %26 : vector<8x256xf32>
    %28 = arith.addf %17, %20 : vector<8x256xf32>
    %29 = arith.negf %28 : vector<8x256xf32>
    %30 = math.exp %29 : vector<8x256xf32>
    %cst_17 = arith.constant 1.000000e+00 : f32
    %31 = vector.broadcast %cst_17 : f32 to vector<8x256xf32>
    %32 = arith.addf %31, %30 : vector<8x256xf32>
    %33 = arith.divf %31, %32 : vector<8x256xf32>
    %34 = arith.mulf %27, %21 : vector<8x256xf32>
    %35 = arith.addf %18, %34 : vector<8x256xf32>
    %36 = math.tanh %35 : vector<8x256xf32>
    %c0_18 = arith.constant 0 : index
    %c0_19 = arith.constant 0 : index
    %37 = vector.load %arg4[%c0_18, %c0_19] : memref<8x256xf32, #tpu.memory_space<vmem>>, vector<8x256xf32>
    %38 = arith.mulf %33, %37 : vector<8x256xf32>
    %cst_20 = arith.constant 1.000000e+00 : f32
    %39 = vector.broadcast %cst_20 : f32 to vector<8x256xf32>
    %40 = arith.subf %39, %33 : vector<8x256xf32>
    %41 = arith.mulf %40, %36 : vector<8x256xf32>
    %42 = arith.addf %38, %41 : vector<8x256xf32>
    %c0_21 = arith.constant 0 : index
    %c0_22 = arith.constant 0 : index
    %43 = vector.load %arg9[%c0_21, %c0_22] : memref<8x256xf32, #tpu.memory_space<vmem>>, vector<8x256xf32>
    tpu.vector_store %arg9[%c0_21, %c0_22], %42 {strides = array<i32>} : memref<8x256xf32, #tpu.memory_space<vmem>>, vector<8x256xf32>,
    return
  }
  func.func @transform_0(%arg0: i32, %arg1: i32) -> (i32, i32) {
    %c0_i32 = arith.constant 0 : i32
    %c0_i32_0 = arith.constant 0 : i32
    return %arg0, %c0_i32 : i32, i32
  }
  func.func @transform_1(%arg0: i32, %arg1: i32) -> (i32, i32) {
    %c0_i32 = arith.constant 0 : i32
    %c0_i32_0 = arith.constant 0 : i32
    return %arg0, %c0_i32 : i32, i32
  }
  func.func @transform_2(%arg0: i32, %arg1: i32) -> (i32, i32) {
    %c0_i32 = arith.constant 0 : i32
    return %arg0, %arg1 : i32, i32
  }
  func.func @transform_3(%arg0: i32, %arg1: i32) -> (i32, i32, i32) {
    %c0_i32 = arith.constant 0 : i32
    %c0_i32_0 = arith.constant 0 : i32
    %c0_i32_1 = arith.constant 0 : i32
    return %arg1, %c0_i32, %c0_i32_0 : i32, i32, i32
  }
  func.func @transform_4(%arg0: i32, %arg1: i32) -> (i32, i32, i32) {
    %c0_i32 = arith.constant 0 : i32
    %c0_i32_0 = arith.constant 0 : i32
    %c0_i32_1 = arith.constant 0 : i32
    return %arg1, %c0_i32, %c0_i32_0 : i32, i32, i32
  }
  func.func @transform_5(%arg0: i32, %arg1: i32) -> (i32, i32, i32) {
    %c0_i32 = arith.constant 0 : i32
    %c0_i32_0 = arith.constant 0 : i32
    %c0_i32_1 = arith.constant 0 : i32
    return %arg1, %c0_i32, %c0_i32_0 : i32, i32, i32
  }
  func.func @transform_6(%arg0: i32, %arg1: i32) -> (i32, i32, i32) {
    %c0_i32 = arith.constant 0 : i32
    %c0_i32_0 = arith.constant 0 : i32
    %c0_i32_1 = arith.constant 0 : i32
    return %arg1, %c0_i32, %c0_i32_0 : i32, i32, i32
  }
  func.func @transform_7(%arg0: i32, %arg1: i32) -> (i32, i32) {
    %c0_i32 = arith.constant 0 : i32
    return %arg0, %arg1 : i32, i32
  }
}

</mosaic_0001>

<llo_original>
// kernel: tpu_custom_call.1
$region0: #{tpu_custom_call.1}
  #allocation0 [shape = 'u32[]', space=smem, size = 0x4, offset = 0x4, fixed_abs, tag = 'smem constant byte address 0x4 - core index']
  #allocation1 [shape = 'u32[144,128]{1,0:T(1,128)}', space=vmem, size = 0x12000, scoped, tag = 'internal scratch']
  %s0 = inlined_call_operand.hbm [shape: f32[8,128], index: 0, kind: input, shape index: {}]
  %s1 = inlined_call_operand.hbm [shape: f32[8,512], index: 1, kind: input, shape index: {}]
  %s2 = inlined_call_operand.hbm [shape: f32[8,512], index: 2, kind: input, shape index: {}]
  %s3 = inlined_call_operand.hbm [shape: f32[2,128,768], index: 3, kind: input, shape index: {}]
  %s4 = inlined_call_operand.hbm [shape: f32[2,512,768], index: 4, kind: input, shape index: {}]
  %s5 = inlined_call_operand.hbm [shape: f32[2,1,768], index: 5, kind: input, shape index: {}]
  %s6 = inlined_call_operand.hbm [shape: f32[2,1,768], index: 6, kind: input, shape index: {}]
  %s7 = inlined_call_operand.hbm [shape: f32[8,512], index: 7, kind: output, shape index: {}]
  %s8 = sld [smem:[#allocation0]]
  $region89: #{tpu_custom_call.1} parent=0
    _
  %s10 = ssub.s32 1, %s8
  %s11 = scalar_select 0, %s10, %s8
  $region1: #{tpu_custom_call.1} parent=0
    #allocation2 [shape = 'u8[4096]{0}', space=vmem, size = 0x1000, scoped, tag = 'input window, operand 0, single buffered']
    #allocation3 [shape = 's32[2]{0}', space=sflag, size = 0x8, scoped, tag = 'scoped memory for tpu_custom_call.1']
    #allocation4 [shape = 's32[2]{0}', space=sflag, size = 0x8, scoped, tag = 'scoped memory for tpu_custom_call.1']
    #allocation5 [shape = 'u8[16384]{0}', space=vmem, size = 0x4000, scoped, tag = 'input window, operand 1, single buffered']
    #allocation6 [shape = 's32[1]{0}', space=sflag, size = 0x4, scoped, tag = 'scoped memory for tpu_custom_call.1']
    #allocation7 [shape = 'u8[16384]{0}', space=vmem, size = 0x4000, scoped, tag = 'input window, operand 2']
    #allocation8 [shape = 'u8[786432]{0}', space=vmem, size = 0xc0000, scoped, tag = 'input window, operand 3']
    #allocation9 [shape = 'u8[3145728]{0}', space=vmem, size = 0x300000, scoped, tag = 'input window, operand 4']
    #allocation10 [shape = 'u8[6144]{0}', space=vmem, size = 0x1800, scoped, tag = 'input window, operand 5']
    #allocation11 [shape = 'u8[6144]{0}', space=vmem, size = 0x1800, scoped, tag = 'input window, operand 6']
    #allocation12 [shape = 'u8[16384]{0}', space=vmem, size = 0x4000, scoped, tag = 'output window, operand 0']
    %12 = vsyncpa [#allocation3], 0
    %13 = vsyncpa [#allocation6], 0
    %14 = vsyncpa [#allocation4], 0
    %s15 = scalar_lea.sflag [#allocation4], 1
    %16 = vsyncpa %s15, 0
    loop: start=0, step=1, limit=4
    $region2: #{tpu_custom_call.1} parent=1 // loop_pre_header
      _
    $region3: #{tpu_custom_call.1} parent=1 // loop_header
      %s18 = sphi 0, %s22
      %p19 = scmp.ge.s32.totalorder %s18, 4
      %s25 = sphi 0, %s37
      %s26 = sphi 0, %s33
      %s27 = sphi 0, %s25
      %s28 = sphi 0, %s26
      %s29 = sphi 0, %s27
      %s30 = sphi 0, %s28
      %s40 = sphi 0, %s42
      %s43 = sphi 0, %s40
      %s44 = sphi 0, %s43
      %s60 = sphi 0, %s44
      %s66 = sphi 0, %s68
      %s69 = sphi 0, %s66
      %s70 = sphi 0, %s69
      %s86 = sphi 0, %s70
      %s94 = sphi 0, %s96
      %s97 = sphi 0, %s94
      %s98 = sphi 0, %s97
      %s114 = sphi 0, %s98
      %s120 = sphi 0, %s122
      %s123 = sphi 0, %s120
      %s124 = sphi 0, %s123
      %s140 = sphi 0, %s124
      %s146 = sphi 0, %s148
      %s149 = sphi 0, %s146
      %s150 = sphi 0, %s149
      %s166 = sphi 0, %s150
      %s172 = sphi 0, %s174
      %s175 = sphi 0, %s172
      %s176 = sphi 0, %s175
      %s192 = sphi 0, %s176
      %s198 = sphi 0, %s200
      %s201 = sphi 0, %s198
      %s202 = sphi 0, %s201
      %s218 = sphi 0, %s202
      %s226 = sphi 0, %s228
      %s229 = sphi 0, %s226
      %s230 = sphi 0, %s229
      %s246 = sphi 0, %s230
    $region4: #{tpu_custom_call.1} parent=1 // loop_header_branch
      %21 = sbr.rel (%p19) target = $region8
    $region5: #{tpu_custom_call.1} parent=1 // loop_body
      %s23 = ssub.s32 %s18, 1
      %s24 = ssub.s32 %s18, 2
      %s31 = sadd.s32 1, %s26
      %p32 = scmp.ge.s32.totalorder %s31, 2
      %s33 = scalar_select %p32, 0, %s31
      %s34 = sadd.s32 1, %s25
      %s35 = scalar_select %p32, %s34, %s25
      %p36 = scmp.ge.s32.totalorder %s35, 1
      %s37 = scalar_select %p36, 0, %s35
      %s38 = ssub.s32 %s25, %s37
      %p39 = scmp.eq.s32.totalorder %s38, 0
      %s41 = sadd.s32 %s40, 1
      %s42 = scalar_select %p39, %s40, %s41
      %p45 = pneg %p39
      %p46 = scmp.eq.s32.totalorder %s18, 1
      %p47 = por %p45, %p46
      %p48 = scmp.ne.s32.totalorder %s40, %s43
      %p49 = scmp.eq.s32.totalorder %s18, 0
      %p50 = por %p48, %p49
      %p51 = scmp.ne.s32.totalorder %s40, %s43
      %p52 = scmp.eq.s32.totalorder %s23, 1
      %p53 = por %p51, %p52
      %p54 = scmp.ne.s32.totalorder %s43, %s44
      %p55 = scmp.eq.s32.totalorder %s23, 0
      %p56 = por %p54, %p55
      %p57 = scmp.ne.s32.totalorder %s43, %s44
      %p58 = scmp.eq.s32.totalorder %s24, 1
      %p59 = por %p57, %p58
      %p61 = scmp.ne.s32.totalorder %s44, %s60
      %p62 = scmp.eq.s32.totalorder %s24, 0
      %p63 = por %p61, %p62
      %s64 = ssub.s32 %s25, %s37
      %p65 = scmp.eq.s32.totalorder %s64, 0
      %s67 = sadd.s32 %s66, 1
      %s68 = scalar_select %p65, %s66, %s67
      %p71 = pneg %p65
      %p72 = scmp.eq.s32.totalorder %s18, 1
      %p73 = por %p71, %p72
      %p74 = scmp.ne.s32.totalorder %s66, %s69
      %p75 = scmp.eq.s32.totalorder %s18, 0
      %p76 = por %p74, %p75
      %p77 = scmp.ne.s32.totalorder %s66, %s69
      %p78 = scmp.eq.s32.totalorder %s23, 1
      %p79 = por %p77, %p78
      %p80 = scmp.ne.s32.totalorder %s69, %s70
      %p81 = scmp.eq.s32.totalorder %s23, 0
      %p82 = por %p80, %p81
      %p83 = scmp.ne.s32.totalorder %s69, %s70
      %p84 = scmp.eq.s32.totalorder %s24, 1
      %p85 = por %p83, %p84
      %p87 = scmp.ne.s32.totalorder %s70, %s86
      %p88 = scmp.eq.s32.totalorder %s24, 0
      %p89 = por %p87, %p88
      %s90 = ssub.s32 %s25, %s37
      %s91 = ssub.s32 %s26, %s33
      %s92 = sor.u32 %s90, %s91
      %p93 = scmp.eq.s32.totalorder %s92, 0
      %s95 = sadd.s32 %s94, 1
      %s96 = scalar_select %p93, %s94, %s95
      %p99 = pneg %p93
      %p100 = scmp.eq.s32.totalorder %s18, 1
      %p101 = por %p99, %p100
      %p102 = scmp.ne.s32.totalorder %s94, %s97
      %p103 = scmp.eq.s32.totalorder %s18, 0
      %p104 = por %p102, %p103
      %p105 = scmp.ne.s32.totalorder %s94, %s97
      %p106 = scmp.eq.s32.totalorder %s23, 1
      %p107 = por %p105, %p106
      %p108 = scmp.ne.s32.totalorder %s97, %s98
      %p109 = scmp.eq.s32.totalorder %s23, 0
      %p110 = por %p108, %p109
      %p111 = scmp.ne.s32.totalorder %s97, %s98
      %p112 = scmp.eq.s32.totalorder %s24, 1
      %p113 = por %p111, %p112
      %p115 = scmp.ne.s32.totalorder %s98, %s114
      %p116 = scmp.eq.s32.totalorder %s24, 0
      %p117 = por %p115, %p116
      %s118 = ssub.s32 %s26, %s33
      %p119 = scmp.eq.s32.totalorder %s118, 0
      %s121 = sadd.s32 %s120, 1
      %s122 = scalar_select %p119, %s120, %s121
      %p125 = pneg %p119
      %p126 = scmp.eq.s32.totalorder %s18, 1
      %p127 = por %p125, %p126
      %p128 = scmp.ne.s32.totalorder %s120, %s123
      %p129 = scmp.eq.s32.totalorder %s18, 0
      %p130 = por %p128, %p129
      %p131 = scmp.ne.s32.totalorder %s120, %s123
      %p132 = scmp.eq.s32.totalorder %s23, 1
      %p133 = por %p131, %p132
      %p134 = scmp.ne.s32.totalorder %s123, %s124
      %p135 = scmp.eq.s32.totalorder %s23, 0
      %p136 = por %p134, %p135
      %p137 = scmp.ne.s32.totalorder %s123, %s124
      %p138 = scmp.eq.s32.totalorder %s24, 1
      %p139 = por %p137, %p138
      %p141 = scmp.ne.s32.totalorder %s124, %s140
      %p142 = scmp.eq.s32.totalorder %s24, 0
      %p143 = por %p141, %p142
      %s144 = ssub.s32 %s26, %s33
      %p145 = scmp.eq.s32.totalorder %s144, 0
      %s147 = sadd.s32 %s146, 1
      %s148 = scalar_select %p145, %s146, %s147
      %p151 = pneg %p145
      %p152 = scmp.eq.s32.totalorder %s18, 1
      %p153 = por %p151, %p152
      %p154 = scmp.ne.s32.totalorder %s146, %s149
      %p155 = scmp.eq.s32.totalorder %s18, 0
      %p156 = por %p154, %p155
      %p157 = scmp.ne.s32.totalorder %s146, %s149
      %p158 = scmp.eq.s32.totalorder %s23, 1
      %p159 = por %p157, %p158
      %p160 = scmp.ne.s32.totalorder %s149, %s150
      %p161 = scmp.eq.s32.totalorder %s23, 0
      %p162 = por %p160, %p161
      %p163 = scmp.ne.s32.totalorder %s149, %s150
      %p164 = scmp.eq.s32.totalorder %s24, 1
      %p165 = por %p163, %p164
      %p167 = scmp.ne.s32.totalorder %s150, %s166
      %p168 = scmp.eq.s32.totalorder %s24, 0
      %p169 = por %p167, %p168
      %s170 = ssub.s32 %s26, %s33
      %p171 = scmp.eq.s32.totalorder %s170, 0
      %s173 = sadd.s32 %s172, 1
      %s174 = scalar_select %p171, %s172, %s173
      %p177 = pneg %p171
      %p178 = scmp.eq.s32.totalorder %s18, 1
      %p179 = por %p177, %p178
      %p180 = scmp.ne.s32.totalorder %s172, %s175
      %p181 = scmp.eq.s32.totalorder %s18, 0
      %p182 = por %p180, %p181
      %p183 = scmp.ne.s32.totalorder %s172, %s175
      %p184 = scmp.eq.s32.totalorder %s23, 1
      %p185 = por %p183, %p184
      %p186 = scmp.ne.s32.totalorder %s175, %s176
      %p187 = scmp.eq.s32.totalorder %s23, 0
      %p188 = por %p186, %p187
      %p189 = scmp.ne.s32.totalorder %s175, %s176
      %p190 = scmp.eq.s32.totalorder %s24, 1
      %p191 = por %p189, %p190
      %p193 = scmp.ne.s32.totalorder %s176, %s192
      %p194 = scmp.eq.s32.totalorder %s24, 0
      %p195 = por %p193, %p194
      %s196 = ssub.s32 %s26, %s33
      %p197 = scmp.eq.s32.totalorder %s196, 0
      %s199 = sadd.s32 %s198, 1
      %s200 = scalar_select %p197, %s198, %s199
      %p203 = pneg %p197
      %p204 = scmp.eq.s32.totalorder %s18, 1
      %p205 = por %p203, %p204
      %p206 = scmp.ne.s32.totalorder %s198, %s201
      %p207 = scmp.eq.s32.totalorder %s18, 0
      %p208 = por %p206, %p207
      %p209 = scmp.ne.s32.totalorder %s198, %s201
      %p210 = scmp.eq.s32.totalorder %s23, 1
      %p211 = por %p209, %p210
      %p212 = scmp.ne.s32.totalorder %s201, %s202
      %p213 = scmp.eq.s32.totalorder %s23, 0
      %p214 = por %p212, %p213
      %p215 = scmp.ne.s32.totalorder %s201, %s202
      %p216 = scmp.eq.s32.totalorder %s24, 1
      %p217 = por %p215, %p216
      %p219 = scmp.ne.s32.totalorder %s202, %s218
      %p220 = scmp.eq.s32.totalorder %s24, 0
      %p221 = por %p219, %p220
      %s222 = ssub.s32 %s25, %s37
      %s223 = ssub.s32 %s26, %s33
      %s224 = sor.u32 %s222, %s223
      %p225 = scmp.eq.s32.totalorder %s224, 0
      %s227 = sadd.s32 %s226, 1
      %s228 = scalar_select %p225, %s226, %s227
      %p231 = pneg %p225
      %p232 = scmp.eq.s32.totalorder %s18, 1
      %p233 = por %p231, %p232
      %p234 = scmp.ne.s32.totalorder %s226, %s229
      %p235 = scmp.eq.s32.totalorder %s18, 0
      %p236 = por %p234, %p235
      %p237 = scmp.ne.s32.totalorder %s226, %s229
      %p238 = scmp.eq.s32.totalorder %s23, 1
      %p239 = por %p237, %p238
      %p240 = scmp.ne.s32.totalorder %s229, %s230
      %p241 = scmp.eq.s32.totalorder %s23, 0
      %p242 = por %p240, %p241
      %p243 = scmp.ne.s32.totalorder %s229, %s230
      %p244 = scmp.eq.s32.totalorder %s24, 1
      %p245 = por %p243, %p244
      %p247 = scmp.ne.s32.totalorder %s230, %s246
      %p248 = scmp.eq.s32.totalorder %s24, 0
      %p249 = por %p247, %p248
      %p250 = scmp.le.s32.totalorder 1, %s18
      %p251 = scmp.lt.s32.totalorder %s18, 3
      %p252 = pnand %p250, %p251
      %p253 = pneg %p252
      // Predicated region
      $region9: #{tpu_custom_call.1} parent=5 // pred_check
        _
      $region10: #{tpu_custom_call.1} parent=5 // pred_check_branch
        %255 = sbr.rel (%p252) target = $region12
      $region11: #{tpu_custom_call.1} parent=5 // pred_region
        %s256 = ssub.s32 %s18, 1
        // Predicated region
        $region13: #{tpu_custom_call.1} parent=11 // pred_check
          %p257 = pneg %p56
        $region14: #{tpu_custom_call.1} parent=11 // pred_check_branch
          %259 = sbr.rel (%p257) target = $region16
        $region15: #{tpu_custom_call.1} parent=11 // pred_region
          %s261 = ssub.s32 128, 128
          %262 = vsyncadd [#allocation3], %s261
          %s263 = smul.addr %s27, 128
          %s264 = scalar_lea.hbm %s0, %s263
          %s266 = sshll.u32 [#allocation2], 4
          %s267 = int_to_ptr.vmem [resolvable:$true] %s266
          %269 = dma.hbm_to_vmem [thread:$0]  %s264, 128, %s267, [#allocation3]
        $region16: #{tpu_custom_call.1} parent=11 // pred_fallthru
          _
        // Predicated region
        $region17: #{tpu_custom_call.1} parent=11 // pred_check
          %p270 = pneg %p82
        $region18: #{tpu_custom_call.1} parent=11 // pred_check_branch
          %272 = sbr.rel (%p270) target = $region20
        $region19: #{tpu_custom_call.1} parent=11 // pred_region
          %s274 = ssub.s32 512, 512
          %275 = vsyncadd [#allocation6], %s274
          %s276 = smul.addr %s27, 4
          %s277 = smul.addr %s276, 128
          %s278 = scalar_lea.hbm %s1, %s277
          %s280 = sshll.u32 [#allocation5], 4
          %s281 = int_to_ptr.vmem [resolvable:$true] %s280
          %283 = dma.hbm_to_vmem [thread:$0]  %s278, 512, %s281, [#allocation6]
        $region20: #{tpu_custom_call.1} parent=11 // pred_fallthru
          _
      $region12: #{tpu_custom_call.1} parent=5 // pred_fallthru
        _
      %p284 = scmp.lt.s32.totalorder %s18, 2
      // Predicated region
      $region21: #{tpu_custom_call.1} parent=5 // pred_check
        %p285 = pneg %p284
      $region22: #{tpu_custom_call.1} parent=5 // pred_check_branch
        %287 = sbr.rel (%p285) target = $region24
      $region23: #{tpu_custom_call.1} parent=5 // pred_region
        // Predicated region
        $region25: #{tpu_custom_call.1} parent=23 // pred_check
          %p288 = pneg %p104
        $region26: #{tpu_custom_call.1} parent=23 // pred_check_branch
          %290 = sbr.rel (%p288) target = $region28
        $region27: #{tpu_custom_call.1} parent=23 // pred_region
          %s291 = sand.u32 %s18, 1
          %s292 = scalar_lea.sflag [#allocation3], %s291
          %s293 = sand.u32 %s94, 1
          %s294 = smul.addr %s293, 16
          %s295 = scalar_lea.vmem [#allocation7], %s294
          %s296 = smul.u32 2, %s26
          %s298 = ssub.s32 256, 256
          %299 = vsyncadd %s292, %s298
          %s300 = smul.addr %s25, 4
          %s301 = sadd.s32 %s296, %s300
          %s302 = smul.addr %s301, 128
          %s303 = scalar_lea.hbm %s2, %s302
          %s305 = sshll.u32 %s295, 4
          %s306 = int_to_ptr.vmem [resolvable:$true] %s305
          %308 = dma.hbm_to_vmem [thread:$0]  %s303, 256, %s306, %s292
        $region28: #{tpu_custom_call.1} parent=23 // pred_fallthru
          _
        // Predicated region
        $region29: #{tpu_custom_call.1} parent=23 // pred_check
          %p309 = pneg %p130
        $region30: #{tpu_custom_call.1} parent=23 // pred_check_branch
          %311 = sbr.rel (%p309) target = $region32
        $region31: #{tpu_custom_call.1} parent=23 // pred_region
          %s312 = sand.u32 %s18, 1
          %s313 = scalar_lea.sflag [#allocation3], %s312
          %s314 = sand.u32 %s120, 1
          %s315 = smul.addr %s314, 768
          %s316 = scalar_lea.vmem [#allocation8], %s315
          %s318 = ssub.s32 12288, 12288
          %319 = vsyncadd %s313, %s318
          %s320 = smul.addr %s26, 96
          %s321 = smul.addr %s320, 128
          %s322 = scalar_lea.hbm %s3, %s321
          %s323 = sshll.u32 %s316, 4
          %s324 = int_to_ptr.vmem [resolvable:$true] %s323
          %329 = dma.hbm_to_vmem [thread:$0]  %s322, 12288, %s324, %s313, 768, 768, 48
        $region32: #{tpu_custom_call.1} parent=23 // pred_fallthru
          _
        // Predicated region
        $region33: #{tpu_custom_call.1} parent=23 // pred_check
          %p330 = pneg %p156
        $region34: #{tpu_custom_call.1} parent=23 // pred_check_branch
          %332 = sbr.rel (%p330) target = $region36
        $region35: #{tpu_custom_call.1} parent=23 // pred_region
          %s333 = sand.u32 %s18, 1
          %s334 = scalar_lea.sflag [#allocation3], %s333
          %s335 = sand.u32 %s146, 1
          %s336 = smul.addr %s335, 3072
          %s337 = scalar_lea.vmem [#allocation9], %s336
          %s339 = ssub.s32 49152, 49152
          %340 = vsyncadd %s334, %s339
          %s341 = smul.addr %s26, 384
          %s342 = smul.addr %s341, 128
          %s343 = scalar_lea.hbm %s4, %s342
          %s344 = sshll.u32 %s337, 4
          %s345 = int_to_ptr.vmem [resolvable:$true] %s344
          %350 = dma.hbm_to_vmem [thread:$0]  %s343, 49152, %s345, %s334, 768, 768, 48
        $region36: #{tpu_custom_call.1} parent=23 // pred_fallthru
          _
        // Predicated region
        $region37: #{tpu_custom_call.1} parent=23 // pred_check
          %p351 = pneg %p182
        $region38: #{tpu_custom_call.1} parent=23 // pred_check_branch
          %353 = sbr.rel (%p351) target = $region40
        $region39: #{tpu_custom_call.1} parent=23 // pred_region
          %s354 = sand.u32 %s18, 1
          %s355 = scalar_lea.sflag [#allocation3], %s354
          %s356 = sand.u32 %s172, 1
          %s357 = smul.addr %s356, 6
          %s358 = scalar_lea.vmem [#allocation10], %s357
          %s360 = ssub.s32 96, 96
          %361 = vsyncadd %s355, %s360
          %s362 = smul.addr %s26, 6
          %s363 = smul.addr %s362, 16
          %s364 = scalar_lea.hbm %s5, %s363
          %s366 = sshll.u32 %s358, 4
          %s367 = int_to_ptr.vmem [resolvable:$true] %s366
          %369 = dma.hbm_to_vmem [thread:$0]  %s364, 96, %s367, %s355
        $region40: #{tpu_custom_call.1} parent=23 // pred_fallthru
          _
        // Predicated region
        $region41: #{tpu_custom_call.1} parent=23 // pred_check
          %p370 = pneg %p208
        $region42: #{tpu_custom_call.1} parent=23 // pred_check_branch
          %372 = sbr.rel (%p370) target = $region44
        $region43: #{tpu_custom_call.1} parent=23 // pred_region
          %s373 = sand.u32 %s18, 1
          %s374 = scalar_lea.sflag [#allocation3], %s373
          %s375 = sand.u32 %s198, 1
          %s376 = smul.addr %s375, 6
          %s377 = scalar_lea.vmem [#allocation11], %s376
          %s379 = ssub.s32 96, 96
          %380 = vsyncadd %s374, %s379
          %s381 = smul.addr %s26, 6
          %s382 = smul.addr %s381, 16
          %s383 = scalar_lea.hbm %s6, %s382
          %s385 = sshll.u32 %s377, 4
          %s386 = int_to_ptr.vmem [resolvable:$true] %s385
          %388 = dma.hbm_to_vmem [thread:$0]  %s383, 96, %s386, %s374
        $region44: #{tpu_custom_call.1} parent=23 // pred_fallthru
          _
      $region24: #{tpu_custom_call.1} parent=5 // pred_fallthru
        _
      %p389 = scmp.le.s32.totalorder 1, %s18
      %p390 = scmp.lt.s32.totalorder %s18, 3
      %p391 = pnand %p389, %p390
      %p392 = pneg %p391
      // Predicated region
      $region45: #{tpu_custom_call.1} parent=5 // pred_check
        _
      $region46: #{tpu_custom_call.1} parent=5 // pred_check_branch
        %394 = sbr.rel (%p391) target = $region48
      $region47: #{tpu_custom_call.1} parent=5 // pred_region
        %s395 = ssub.s32 %s18, 1
        // Predicated region
        $region49: #{tpu_custom_call.1} parent=47 // pred_check
          %p396 = pneg %p56
        $region50: #{tpu_custom_call.1} parent=47 // pred_check_branch
          %398 = sbr.rel (%p396) target = $region52
        $region51: #{tpu_custom_call.1} parent=47 // pred_region
          %399 = dma.done [#allocation3], 128
        $region52: #{tpu_custom_call.1} parent=47 // pred_fallthru
          _
        // Predicated region
        $region53: #{tpu_custom_call.1} parent=47 // pred_check
          %p400 = pneg %p82
        $region54: #{tpu_custom_call.1} parent=47 // pred_check_branch
          %402 = sbr.rel (%p400) target = $region56
        $region55: #{tpu_custom_call.1} parent=47 // pred_region
          %403 = dma.done [#allocation6], 512
        $region56: #{tpu_custom_call.1} parent=47 // pred_fallthru
          _
        %s404 = sand.u32 %s23, 1
        %s405 = scalar_lea.sflag [#allocation3], %s404
        %s406 = sand.u32 %s97, 1
        %s407 = smul.addr %s406, 16
        %s408 = scalar_lea.vmem [#allocation7], %s407
        // Predicated region
        $region57: #{tpu_custom_call.1} parent=47 // pred_check
          %p409 = pneg %p110
        $region58: #{tpu_custom_call.1} parent=47 // pred_check_branch
          %411 = sbr.rel (%p409) target = $region60
        $region59: #{tpu_custom_call.1} parent=47 // pred_region
          %412 = dma.done %s405, 256
        $region60: #{tpu_custom_call.1} parent=47 // pred_fallthru
          _
        %s413 = sand.u32 %s23, 1
        %s414 = scalar_lea.sflag [#allocation3], %s413
        %s415 = sand.u32 %s123, 1
        %s416 = smul.addr %s415, 768
        %s417 = scalar_lea.vmem [#allocation8], %s416
        // Predicated region
        $region61: #{tpu_custom_call.1} parent=47 // pred_check
          %p418 = pneg %p136
        $region62: #{tpu_custom_call.1} parent=47 // pred_check_branch
          %420 = sbr.rel (%p418) target = $region64
        $region63: #{tpu_custom_call.1} parent=47 // pred_region
          %421 = dma.done %s414, 12288
        $region64: #{tpu_custom_call.1} parent=47 // pred_fallthru
          _
        %s422 = sand.u32 %s23, 1
        %s423 = scalar_lea.sflag [#allocation3], %s422
        %s424 = sand.u32 %s149, 1
        %s425 = smul.addr %s424, 3072
        %s426 = scalar_lea.vmem [#allocation9], %s425
        // Predicated region
        $region65: #{tpu_custom_call.1} parent=47 // pred_check
          %p427 = pneg %p162
        $region66: #{tpu_custom_call.1} parent=47 // pred_check_branch
          %429 = sbr.rel (%p427) target = $region68
        $region67: #{tpu_custom_call.1} parent=47 // pred_region
          %430 = dma.done %s423, 49152
        $region68: #{tpu_custom_call.1} parent=47 // pred_fallthru
          _
        %s431 = sand.u32 %s23, 1
        %s432 = scalar_lea.sflag [#allocation3], %s431
        %s433 = sand.u32 %s175, 1
        %s434 = smul.addr %s433, 6
        %s435 = scalar_lea.vmem [#allocation10], %s434
        // Predicated region
        $region69: #{tpu_custom_call.1} parent=47 // pred_check
          %p436 = pneg %p188
        $region70: #{tpu_custom_call.1} parent=47 // pred_check_branch
          %438 = sbr.rel (%p436) target = $region72
        $region71: #{tpu_custom_call.1} parent=47 // pred_region
          %439 = dma.done %s432, 96
        $region72: #{tpu_custom_call.1} parent=47 // pred_fallthru
          _
        %s440 = sand.u32 %s23, 1
        %s441 = scalar_lea.sflag [#allocation3], %s440
        %s442 = sand.u32 %s201, 1
        %s443 = smul.addr %s442, 6
        %s444 = scalar_lea.vmem [#allocation11], %s443
        // Predicated region
        $region73: #{tpu_custom_call.1} parent=47 // pred_check
          %p445 = pneg %p214
        $region74: #{tpu_custom_call.1} parent=47 // pred_check_branch
          %447 = sbr.rel (%p445) target = $region76
        $region75: #{tpu_custom_call.1} parent=47 // pred_region
          %448 = dma.done %s441, 96
        $region76: #{tpu_custom_call.1} parent=47 // pred_fallthru
          _
        %p449 = pneg %p56
        %p450 = pneg %p53
        %p451 = pneg %p82
        %p452 = pneg %p79
        %s453 = sand.u32 %s23, 1
        %s454 = scalar_lea.sflag [#allocation3], %s453
        %s455 = sand.u32 %s97, 1
        %s456 = smul.addr %s455, 16
        %s457 = scalar_lea.vmem [#allocation7], %s456
        %p458 = pneg %p110
        %p459 = pneg %p107
        %s460 = sand.u32 %s23, 1
        %s461 = scalar_lea.sflag [#allocation3], %s460
        %s462 = sand.u32 %s123, 1
        %s463 = smul.addr %s462, 768
        %s464 = scalar_lea.vmem [#allocation8], %s463
        %p465 = pneg %p136
        %p466 = pneg %p133
        %s467 = sand.u32 %s23, 1
        %s468 = scalar_lea.sflag [#allocation3], %s467
        %s469 = sand.u32 %s149, 1
        %s470 = smul.addr %s469, 3072
        %s471 = scalar_lea.vmem [#allocation9], %s470
        %p472 = pneg %p162
        %p473 = pneg %p159
        %s474 = sand.u32 %s23, 1
        %s475 = scalar_lea.sflag [#allocation3], %s474
        %s476 = sand.u32 %s175, 1
        %s477 = smul.addr %s476, 6
        %s478 = scalar_lea.vmem [#allocation10], %s477
        %p479 = pneg %p188
        %p480 = pneg %p185
        %s481 = sand.u32 %s23, 1
        %s482 = scalar_lea.sflag [#allocation3], %s481
        %s483 = sand.u32 %s201, 1
        %s484 = smul.addr %s483, 6
        %s485 = scalar_lea.vmem [#allocation11], %s484
        %p486 = pneg %p214
        %p487 = pneg %p211
        %p488 = pneg %p242
        %p489 = pneg %p239
        %s490 = sand.u32 %s229, 1
        %s491 = scalar_lea.sflag [#allocation4], %s490
        %s492 = sand.u32 %s229, 1
        %s493 = smul.addr %s492, 16
        %s494 = scalar_lea.vmem [#allocation12], %s493
        %s495 = smul.u32 2, %s28
        %s496 = smul.u32 2, %s28
        %v497 = vld [vmem:[#allocation2] sm:$0xff]
        %v498 = vld [vmem:[#allocation5] sm:$0xff]
        %v499 = vld [vmem:[#allocation5 + $0x8] sm:$0xff]
        %v500 = vld [vmem:[#allocation5 + $0x10] sm:$0xff]
        %v501 = vld [vmem:[#allocation5 + $0x18] sm:$0xff]
        %v502 = vld [vmem:[%s417] sm:$0xff]
        %v503 = vld [vmem:[%s417 + $0x8] sm:$0xff]
        %v504 = vld [vmem:[%s417 + $0x10] sm:$0xff]
        %v505 = vld [vmem:[%s417 + $0x18] sm:$0xff]
        %v506 = vld [vmem:[%s417 + $0x20] sm:$0xff]
        %v507 = vld [vmem:[%s417 + $0x28] sm:$0xff]
        %v508 = vld [vmem:[%s417 + $0x30] sm:$0xff]
        %v509 = vld [vmem:[%s417 + $0x38] sm:$0xff]
        %v510 = vld [vmem:[%s417 + $0x40] sm:$0xff]
        %v511 = vld [vmem:[%s417 + $0x48] sm:$0xff]
        %v512 = vld [vmem:[%s417 + $0x50] sm:$0xff]
        %v513 = vld [vmem:[%s417 + $0x58] sm:$0xff]
        %v514 = vld [vmem:[%s417 + $0x60] sm:$0xff]
        %v515 = vld [vmem:[%s417 + $0x68] sm:$0xff]
        %v516 = vld [vmem:[%s417 + $0x70] sm:$0xff]
        %v517 = vld [vmem:[%s417 + $0x78] sm:$0xff]
        %v518 = vld [vmem:[%s417 + $0x80] sm:$0xff]
        %v519 = vld [vmem:[%s417 + $0x88] sm:$0xff]
        %v520 = vld [vmem:[%s417 + $0x90] sm:$0xff]
        %v521 = vld [vmem:[%s417 + $0x98] sm:$0xff]
        %v522 = vld [vmem:[%s417 + $0xa0] sm:$0xff]
        %v523 = vld [vmem:[%s417 + $0xa8] sm:$0xff]
        %v524 = vld [vmem:[%s417 + $0xb0] sm:$0xff]
        %v525 = vld [vmem:[%s417 + $0xb8] sm:$0xff]
        %v526 = vld [vmem:[%s417 + $0xc0] sm:$0xff]
        %v527 = vld [vmem:[%s417 + $0xc8] sm:$0xff]
        %v528 = vld [vmem:[%s417 + $0xd0] sm:$0xff]
        %v529 = vld [vmem:[%s417 + $0xd8] sm:$0xff]
        %v530 = vld [vmem:[%s417 + $0xe0] sm:$0xff]
        %v531 = vld [vmem:[%s417 + $0xe8] sm:$0xff]
        %v532 = vld [vmem:[%s417 + $0xf0] sm:$0xff]
        %v533 = vld [vmem:[%s417 + $0xf8] sm:$0xff]
        %v534 = vld [vmem:[%s417 + $0x100] sm:$0xff]
        %v535 = vld [vmem:[%s417 + $0x108] sm:$0xff]
        %v536 = vld [vmem:[%s417 + $0x110] sm:$0xff]
        %v537 = vld [vmem:[%s417 + $0x118] sm:$0xff]
        %v538 = vld [vmem:[%s417 + $0x120] sm:$0xff]
        %v539 = vld [vmem:[%s417 + $0x128] sm:$0xff]
        %v540 = vld [vmem:[%s417 + $0x130] sm:$0xff]
        %v541 = vld [vmem:[%s417 + $0x138] sm:$0xff]
        %v542 = vld [vmem:[%s417 + $0x140] sm:$0xff]
        %v543 = vld [vmem:[%s417 + $0x148] sm:$0xff]
        %v544 = vld [vmem:[%s417 + $0x150] sm:$0xff]
        %v545 = vld [vmem:[%s417 + $0x158] sm:$0xff]
        %v546 = vld [vmem:[%s417 + $0x160] sm:$0xff]
        %v547 = vld [vmem:[%s417 + $0x168] sm:$0xff]
        %v548 = vld [vmem:[%s417 + $0x170] sm:$0xff]
        %v549 = vld [vmem:[%s417 + $0x178] sm:$0xff]
        %v550 = vld [vmem:[%s417 + $0x180] sm:$0xff]
        %v551 = vld [vmem:[%s417 + $0x188] sm:$0xff]
        %v552 = vld [vmem:[%s417 + $0x190] sm:$0xff]
        %v553 = vld [vmem:[%s417 + $0x198] sm:$0xff]
        %v554 = vld [vmem:[%s417 + $0x1a0] sm:$0xff]
        %v555 = vld [vmem:[%s417 + $0x1a8] sm:$0xff]
        %v556 = vld [vmem:[%s417 + $0x1b0] sm:$0xff]
        %v557 = vld [vmem:[%s417 + $0x1b8] sm:$0xff]
        %v558 = vld [vmem:[%s417 + $0x1c0] sm:$0xff]
        %v559 = vld [vmem:[%s417 + $0x1c8] sm:$0xff]
        %v560 = vld [vmem:[%s417 + $0x1d0] sm:$0xff]
        %v561 = vld [vmem:[%s417 + $0x1d8] sm:$0xff]
        %v562 = vld [vmem:[%s417 + $0x1e0] sm:$0xff]
        %v563 = vld [vmem:[%s417 + $0x1e8] sm:$0xff]
        %v564 = vld [vmem:[%s417 + $0x1f0] sm:$0xff]
        %v565 = vld [vmem:[%s417 + $0x1f8] sm:$0xff]
        %v566 = vld [vmem:[%s417 + $0x200] sm:$0xff]
        %v567 = vld [vmem:[%s417 + $0x208] sm:$0xff]
        %v568 = vld [vmem:[%s417 + $0x210] sm:$0xff]
        %v569 = vld [vmem:[%s417 + $0x218] sm:$0xff]
        %v570 = vld [vmem:[%s417 + $0x220] sm:$0xff]
        %v571 = vld [vmem:[%s417 + $0x228] sm:$0xff]
        %v572 = vld [vmem:[%s417 + $0x230] sm:$0xff]
        %v573 = vld [vmem:[%s417 + $0x238] sm:$0xff]
        %v574 = vld [vmem:[%s417 + $0x240] sm:$0xff]
        %v575 = vld [vmem:[%s417 + $0x248] sm:$0xff]
        %v576 = vld [vmem:[%s417 + $0x250] sm:$0xff]
        %v577 = vld [vmem:[%s417 + $0x258] sm:$0xff]
        %v578 = vld [vmem:[%s417 + $0x260] sm:$0xff]
        %v579 = vld [vmem:[%s417 + $0x268] sm:$0xff]
        %v580 = vld [vmem:[%s417 + $0x270] sm:$0xff]
        %v581 = vld [vmem:[%s417 + $0x278] sm:$0xff]
        %v582 = vld [vmem:[%s417 + $0x280] sm:$0xff]
        %v583 = vld [vmem:[%s417 + $0x288] sm:$0xff]
        %v584 = vld [vmem:[%s417 + $0x290] sm:$0xff]
        %v585 = vld [vmem:[%s417 + $0x298] sm:$0xff]
        %v586 = vld [vmem:[%s417 + $0x2a0] sm:$0xff]
        %v587 = vld [vmem:[%s417 + $0x2a8] sm:$0xff]
        %v588 = vld [vmem:[%s417 + $0x2b0] sm:$0xff]
        %v589 = vld [vmem:[%s417 + $0x2b8] sm:$0xff]
        %v590 = vld [vmem:[%s417 + $0x2c0] sm:$0xff]
        %v591 = vld [vmem:[%s417 + $0x2c8] sm:$0xff]
        %v592 = vld [vmem:[%s417 + $0x2d0] sm:$0xff]
        %v593 = vld [vmem:[%s417 + $0x2d8] sm:$0xff]
        %v594 = vld [vmem:[%s417 + $0x2e0] sm:$0xff]
        %v595 = vld [vmem:[%s417 + $0x2e8] sm:$0xff]
        %v596 = vld [vmem:[%s417 + $0x2f0] sm:$0xff]
        %v597 = vld [vmem:[%s417 + $0x2f8] sm:$0xff]
        %v598 = vld [vmem:[%s435] sm:$0x3f]
        %v600 = vlaneseq
        %v601 = vshrl.u32 %v600, 7
        %v602 = vsub.s32 0, %v601
        %v603 = vrot.slane %v598, %v602
        %v604 = vlaneseq
        %v605 = vshrl.u32 %v604, 7
        %v606 = vsub.s32 1, %v605
        %v607 = vrot.slane %v598, %v606
        %v608 = vlaneseq
        %v609 = vshrl.u32 %v608, 7
        %v610 = vsub.s32 2, %v609
        %v611 = vrot.slane %v598, %v610
        %v612 = vlaneseq
        %v613 = vshrl.u32 %v612, 7
        %v614 = vsub.s32 3, %v613
        %v615 = vrot.slane %v598, %v614
        %v616 = vlaneseq
        %v617 = vshrl.u32 %v616, 7
        %v618 = vsub.s32 4, %v617
        %v619 = vrot.slane %v598, %v618
        %v620 = vlaneseq
        %v621 = vshrl.u32 %v620, 7
        %v622 = vsub.s32 5, %v621
        %v623 = vrot.slane %v598, %v622
        %630 = vmatprep.subr.mxu0 %v593
        %631 = vmatpush1.msra.mxu0 %v592
        %632 = vmatprep.subr.mxu0 %v587
        %633 = vmatpush1.msra.mxu0 %v586
        %634 = vmatprep.subr.mxu0 %v581
        %635 = vmatpush1.msra.mxu0 %v580
        %636 = vmatprep.subr.mxu0 %v575
        %637 = vmatpush1.msra.mxu0 %v574
        %638 = vmatprep.subr.mxu0 %v569
        %639 = vmatpush1.msra.mxu0 %v568
        %640 = vmatprep.subr.mxu0 %v563
        %641 = vmatpush1.msra.mxu0 %v562
        %642 = vmatprep.subr.mxu0 %v557
        %643 = vmatpush1.msra.mxu0 %v556
        %644 = vmatprep.subr.mxu0 %v551
        %645 = vmatpush1.msra.mxu0 %v550
        %646 = vmatprep.subr.mxu0 %v545
        %647 = vmatpush1.msra.mxu0 %v544
        %648 = vmatprep.subr.mxu0 %v539
        %649 = vmatpush1.msra.mxu0 %v538
        %650 = vmatprep.subr.mxu0 %v533
        %651 = vmatpush1.msra.mxu0 %v532
        %652 = vmatprep.subr.mxu0 %v527
        %653 = vmatpush1.msra.mxu0 %v526
        %654 = vmatprep.subr.mxu0 %v521
        %655 = vmatpush1.msra.mxu0 %v520
        %656 = vmatprep.subr.mxu0 %v515
        %657 = vmatpush1.msra.mxu0 %v514
        %658 = vmatprep.subr.mxu0 %v509
        %659 = vmatpush1.msra.mxu0 %v508
        %660 = vmatprep.subr.mxu0 %v503
        %661 = vmatpush1.msra.mxu0 %v502
        %662 = vmatprep.subr.mxu0 0.0
        %663 = vmatpush2.msra.mxu0 0.0
        %664 = vmatprep.subr.mxu0 0.0
        %665 = vmatpush2.msra.mxu0 0.0
        %666 = vmatprep.subr.mxu0 0.0
        %667 = vmatpush2.msra.mxu0 0.0
        %668 = vmatprep.subr.mxu0 0.0
        %669 = vmatpush2.msra.mxu0 0.0
        %670 = vmatprep.subr.mxu0 0.0
        %671 = vmatpush2.msra.mxu0 0.0
        %672 = vmatprep.subr.mxu0 0.0
        %673 = vmatpush2.msra.mxu0 0.0
        %674 = vmatprep.subr.mxu0 0.0
        %675 = vmatpush2.msra.mxu0 0.0
        %676 = vmatprep.subr.mxu0 0.0
        %677 = vmatpush2.msra.mxu0 0.0
        %678 = vmatprep.subr.mxu0 0.0
        %679 = vmatpush2.msra.mxu0 0.0
        %680 = vmatprep.subr.mxu0 0.0
        %681 = vmatpush2.msra.mxu0 0.0
        %682 = vmatprep.subr.mxu0 0.0
        %683 = vmatpush2.msra.mxu0 0.0
        %684 = vmatprep.subr.mxu0 0.0
        %685 = vmatpush2.msra.mxu0 0.0
        %686 = vmatprep.subr.mxu0 0.0
        %687 = vmatpush2.msra.mxu0 0.0
        %688 = vmatprep.subr.mxu0 0.0
        %689 = vmatpush2.msra.mxu0 0.0
        %690 = vmatprep.subr.mxu0 0.0
        %691 = vmatpush2.msra.mxu0 0.0
        %692 = vmatprep.subr.mxu0 0.0
        %693 = vmatpush2.msra.mxu0 0.0
        %694 = vmatprep.mubr.f32.mxu0 0.0
        %695 = vmatmul.mubr.f32.gmra.mxu0 %v497
        %v696 = vpop.f32.mrf.mxu0
        %v697 = vadd.f32 %v603, %v696
        %v698 = vpop.f32.mrf.mxu0
        %v699 = vadd.f32 %v607, %v698
        %700 = vdwg.mxu0
        %701 = vmatprep.subr.mxu0 %v595
        %702 = vmatpush1.msra.mxu0 %v594
        %703 = vmatprep.subr.mxu0 %v589
        %704 = vmatpush1.msra.mxu0 %v588
        %705 = vmatprep.subr.mxu0 %v583
        %706 = vmatpush1.msra.mxu0 %v582
        %707 = vmatprep.subr.mxu0 %v577
        %708 = vmatpush1.msra.mxu0 %v576
        %709 = vmatprep.subr.mxu0 %v571
        %710 = vmatpush1.msra.mxu0 %v570
        %711 = vmatprep.subr.mxu0 %v565
        %712 = vmatpush1.msra.mxu0 %v564
        %713 = vmatprep.subr.mxu0 %v559
        %714 = vmatpush1.msra.mxu0 %v558
        %715 = vmatprep.subr.mxu0 %v553
        %716 = vmatpush1.msra.mxu0 %v552
        %717 = vmatprep.subr.mxu0 %v547
        %718 = vmatpush1.msra.mxu0 %v546
        %719 = vmatprep.subr.mxu0 %v541
        %720 = vmatpush1.msra.mxu0 %v540
        %721 = vmatprep.subr.mxu0 %v535
        %722 = vmatpush1.msra.mxu0 %v534
        %723 = vmatprep.subr.mxu0 %v529
        %724 = vmatpush1.msra.mxu0 %v528
        %725 = vmatprep.subr.mxu0 %v523
        %726 = vmatpush1.msra.mxu0 %v522
        %727 = vmatprep.subr.mxu0 %v517
        %728 = vmatpush1.msra.mxu0 %v516
        %729 = vmatprep.subr.mxu0 %v511
        %730 = vmatpush1.msra.mxu0 %v510
        %731 = vmatprep.subr.mxu0 %v505
        %732 = vmatpush1.msra.mxu0 %v504
        %733 = vmatprep.subr.mxu0 0.0
        %734 = vmatpush2.msra.mxu0 0.0
        %735 = vmatprep.subr.mxu0 0.0
        %736 = vmatpush2.msra.mxu0 0.0
        %737 = vmatprep.subr.mxu0 0.0
        %738 = vmatpush2.msra.mxu0 0.0
        %739 = vmatprep.subr.mxu0 0.0
        %740 = vmatpush2.msra.mxu0 0.0
        %741 = vmatprep.subr.mxu0 0.0
        %742 = vmatpush2.msra.mxu0 0.0
        %743 = vmatprep.subr.mxu0 0.0
        %744 = vmatpush2.msra.mxu0 0.0
        %745 = vmatprep.subr.mxu0 0.0
        %746 = vmatpush2.msra.mxu0 0.0
        %747 = vmatprep.subr.mxu0 0.0
        %748 = vmatpush2.msra.mxu0 0.0
        %749 = vmatprep.subr.mxu0 0.0
        %750 = vmatpush2.msra.mxu0 0.0
        %751 = vmatprep.subr.mxu0 0.0
        %752 = vmatpush2.msra.mxu0 0.0
        %753 = vmatprep.subr.mxu0 0.0
        %754 = vmatpush2.msra.mxu0 0.0
        %755 = vmatprep.subr.mxu0 0.0
        %756 = vmatpush2.msra.mxu0 0.0
        %757 = vmatprep.subr.mxu0 0.0
        %758 = vmatpush2.msra.mxu0 0.0
        %759 = vmatprep.subr.mxu0 0.0
        %760 = vmatpush2.msra.mxu0 0.0
        %761 = vmatprep.subr.mxu0 0.0
        %762 = vmatpush2.msra.mxu0 0.0
        %763 = vmatprep.subr.mxu0 0.0
        %764 = vmatpush2.msra.mxu0 0.0
        %765 = vmatprep.mubr.f32.mxu0 0.0
        %766 = vmatmul.mubr.f32.gmra.mxu0 %v497
        %v767 = vpop.f32.mrf.mxu0
        %v768 = vadd.f32 %v611, %v767
        %v769 = vpop.f32.mrf.mxu0
        %v770 = vadd.f32 %v615, %v769
        %771 = vdwg.mxu0
        %772 = vmatprep.subr.mxu0 %v597
        %773 = vmatpush1.msra.mxu0 %v596
        %774 = vmatprep.subr.mxu0 %v591
        %775 = vmatpush1.msra.mxu0 %v590
        %776 = vmatprep.subr.mxu0 %v585
        %777 = vmatpush1.msra.mxu0 %v584
        %778 = vmatprep.subr.mxu0 %v579
        %779 = vmatpush1.msra.mxu0 %v578
        %780 = vmatprep.subr.mxu0 %v573
        %781 = vmatpush1.msra.mxu0 %v572
        %782 = vmatprep.subr.mxu0 %v567
        %783 = vmatpush1.msra.mxu0 %v566
        %784 = vmatprep.subr.mxu0 %v561
        %785 = vmatpush1.msra.mxu0 %v560
        %786 = vmatprep.subr.mxu0 %v555
        %787 = vmatpush1.msra.mxu0 %v554
        %788 = vmatprep.subr.mxu0 %v549
        %789 = vmatpush1.msra.mxu0 %v548
        %790 = vmatprep.subr.mxu0 %v543
        %791 = vmatpush1.msra.mxu0 %v542
        %792 = vmatprep.subr.mxu0 %v537
        %793 = vmatpush1.msra.mxu0 %v536
        %794 = vmatprep.subr.mxu0 %v531
        %795 = vmatpush1.msra.mxu0 %v530
        %796 = vmatprep.subr.mxu0 %v525
        %797 = vmatpush1.msra.mxu0 %v524
        %798 = vmatprep.subr.mxu0 %v519
        %799 = vmatpush1.msra.mxu0 %v518
        %800 = vmatprep.subr.mxu0 %v513
        %801 = vmatpush1.msra.mxu0 %v512
        %802 = vmatprep.subr.mxu0 %v507
        %803 = vmatpush1.msra.mxu0 %v506
        %804 = vmatprep.subr.mxu0 0.0
        %805 = vmatpush2.msra.mxu0 0.0
        %806 = vmatprep.subr.mxu0 0.0
        %807 = vmatpush2.msra.mxu0 0.0
        %808 = vmatprep.subr.mxu0 0.0
        %809 = vmatpush2.msra.mxu0 0.0
        %810 = vmatprep.subr.mxu0 0.0
        %811 = vmatpush2.msra.mxu0 0.0
        %812 = vmatprep.subr.mxu0 0.0
        %813 = vmatpush2.msra.mxu0 0.0
        %814 = vmatprep.subr.mxu0 0.0
        %815 = vmatpush2.msra.mxu0 0.0
        %816 = vmatprep.subr.mxu0 0.0
        %817 = vmatpush2.msra.mxu0 0.0
        %818 = vmatprep.subr.mxu0 0.0
        %819 = vmatpush2.msra.mxu0 0.0
        %820 = vmatprep.subr.mxu0 0.0
        %821 = vmatpush2.msra.mxu0 0.0
        %822 = vmatprep.subr.mxu0 0.0
        %823 = vmatpush2.msra.mxu0 0.0
        %824 = vmatprep.subr.mxu0 0.0
        %825 = vmatpush2.msra.mxu0 0.0
        %826 = vmatprep.subr.mxu0 0.0
        %827 = vmatpush2.msra.mxu0 0.0
        %828 = vmatprep.subr.mxu0 0.0
        %829 = vmatpush2.msra.mxu0 0.0
        %830 = vmatprep.subr.mxu0 0.0
        %831 = vmatpush2.msra.mxu0 0.0
        %832 = vmatprep.subr.mxu0 0.0
        %833 = vmatpush2.msra.mxu0 0.0
        %834 = vmatprep.subr.mxu0 0.0
        %835 = vmatpush2.msra.mxu0 0.0
        %836 = vmatprep.mubr.f32.mxu0 0.0
        %837 = vmatmul.mubr.f32.gmra.mxu0 %v497
        %v838 = vpop.f32.mrf.mxu0
        %v839 = vadd.f32 %v619, %v838
        %v840 = vpop.f32.mrf.mxu0
        %v841 = vadd.f32 %v623, %v840
        %842 = vdwg.mxu0
        %v843 = vld [vmem:[%s426] sm:$0xff]
        %v844 = vld [vmem:[%s426 + $0x8] sm:$0xff]
        %v845 = vld [vmem:[%s426 + $0x10] sm:$0xff]
        %v846 = vld [vmem:[%s426 + $0x18] sm:$0xff]
        %v847 = vld [vmem:[%s426 + $0x20] sm:$0xff]
        %v848 = vld [vmem:[%s426 + $0x28] sm:$0xff]
        %v849 = vld [vmem:[%s426 + $0x30] sm:$0xff]
        %v850 = vld [vmem:[%s426 + $0x38] sm:$0xff]
        %v851 = vld [vmem:[%s426 + $0x40] sm:$0xff]
        %v852 = vld [vmem:[%s426 + $0x48] sm:$0xff]
        %v853 = vld [vmem:[%s426 + $0x50] sm:$0xff]
        %v854 = vld [vmem:[%s426 + $0x58] sm:$0xff]
        %v855 = vld [vmem:[%s426 + $0x60] sm:$0xff]
        %v856 = vld [vmem:[%s426 + $0x68] sm:$0xff]
        %v857 = vld [vmem:[%s426 + $0x70] sm:$0xff]
        %v858 = vld [vmem:[%s426 + $0x78] sm:$0xff]
        %v859 = vld [vmem:[%s426 + $0x80] sm:$0xff]
        %v860 = vld [vmem:[%s426 + $0x88] sm:$0xff]
        %v861 = vld [vmem:[%s426 + $0x90] sm:$0xff]
        %v862 = vld [vmem:[%s426 + $0x98] sm:$0xff]
        %v863 = vld [vmem:[%s426 + $0xa0] sm:$0xff]
        %v864 = vld [vmem:[%s426 + $0xa8] sm:$0xff]
        %v865 = vld [vmem:[%s426 + $0xb0] sm:$0xff]
        %v866 = vld [vmem:[%s426 + $0xb8] sm:$0xff]
        %v867 = vld [vmem:[%s426 + $0xc0] sm:$0xff]
        %v868 = vld [vmem:[%s426 + $0xc8] sm:$0xff]
        %v869 = vld [vmem:[%s426 + $0xd0] sm:$0xff]
        %v870 = vld [vmem:[%s426 + $0xd8] sm:$0xff]
        %v871 = vld [vmem:[%s426 + $0xe0] sm:$0xff]
        %v872 = vld [vmem:[%s426 + $0xe8] sm:$0xff]
        %v873 = vld [vmem:[%s426 + $0xf0] sm:$0xff]
        %v874 = vld [vmem:[%s426 + $0xf8] sm:$0xff]
        %v875 = vld [vmem:[%s426 + $0x100] sm:$0xff]
        %v876 = vld [vmem:[%s426 + $0x108] sm:$0xff]
        %v877 = vld [vmem:[%s426 + $0x110] sm:$0xff]
        %v878 = vld [vmem:[%s426 + $0x118] sm:$0xff]
        %v879 = vld [vmem:[%s426 + $0x120] sm:$0xff]
        %v880 = vld [vmem:[%s426 + $0x128] sm:$0xff]
        %v881 = vld [vmem:[%s426 + $0x130] sm:$0xff]
        %v882 = vld [vmem:[%s426 + $0x138] sm:$0xff]
        %v883 = vld [vmem:[%s426 + $0x140] sm:$0xff]
        %v884 = vld [vmem:[%s426 + $0x148] sm:$0xff]
        %v885 = vld [vmem:[%s426 + $0x150] sm:$0xff]
        %v886 = vld [vmem:[%s426 + $0x158] sm:$0xff]
        %v887 = vld [vmem:[%s426 + $0x160] sm:$0xff]
        %v888 = vld [vmem:[%s426 + $0x168] sm:$0xff]
        %v889 = vld [vmem:[%s426 + $0x170] sm:$0xff]
        %v890 = vld [vmem:[%s426 + $0x178] sm:$0xff]
        %v891 = vld [vmem:[%s426 + $0x180] sm:$0xff]
        %v892 = vld [vmem:[%s426 + $0x188] sm:$0xff]
        %v893 = vld [vmem:[%s426 + $0x190] sm:$0xff]
        %v894 = vld [vmem:[%s426 + $0x198] sm:$0xff]
        %v895 = vld [vmem:[%s426 + $0x1a0] sm:$0xff]
        %v896 = vld [vmem:[%s426 + $0x1a8] sm:$0xff]
        %v897 = vld [vmem:[%s426 + $0x1b0] sm:$0xff]
        %v898 = vld [vmem:[%s426 + $0x1b8] sm:$0xff]
        %v899 = vld [vmem:[%s426 + $0x1c0] sm:$0xff]
        %v900 = vld [vmem:[%s426 + $0x1c8] sm:$0xff]
        %v901 = vld [vmem:[%s426 + $0x1d0] sm:$0xff]
        %v902 = vld [vmem:[%s426 + $0x1d8] sm:$0xff]
        %v903 = vld [vmem:[%s426 + $0x1e0] sm:$0xff]
        %v904 = vld [vmem:[%s426 + $0x1e8] sm:$0xff]
        %v905 = vld [vmem:[%s426 + $0x1f0] sm:$0xff]
        %v906 = vld [vmem:[%s426 + $0x1f8] sm:$0xff]
        %v907 = vld [vmem:[%s426 + $0x200] sm:$0xff]
        %v908 = vld [vmem:[%s426 + $0x208] sm:$0xff]
        %v909 = vld [vmem:[%s426 + $0x210] sm:$0xff]
        %v910 = vld [vmem:[%s426 + $0x218] sm:$0xff]
        %v911 = vld [vmem:[%s426 + $0x220] sm:$0xff]
        %v912 = vld [vmem:[%s426 + $0x228] sm:$0xff]
        %v913 = vld [vmem:[%s426 + $0x230] sm:$0xff]
        %v914 = vld [vmem:[%s426 + $0x238] sm:$0xff]
        %v915 = vld [vmem:[%s426 + $0x240] sm:$0xff]
        %v916 = vld [vmem:[%s426 + $0x248] sm:$0xff]
        %v917 = vld [vmem:[%s426 + $0x250] sm:$0xff]
        %v918 = vld [vmem:[%s426 + $0x258] sm:$0xff]
        %v919 = vld [vmem:[%s426 + $0x260] sm:$0xff]
        %v920 = vld [vmem:[%s426 + $0x268] sm:$0xff]
        %v921 = vld [vmem:[%s426 + $0x270] sm:$0xff]
        %v922 = vld [vmem:[%s426 + $0x278] sm:$0xff]
        %v923 = vld [vmem:[%s426 + $0x280] sm:$0xff]
        %v924 = vld [vmem:[%s426 + $0x288] sm:$0xff]
        %v925 = vld [vmem:[%s426 + $0x290] sm:$0xff]
        %v926 = vld [vmem:[%s426 + $0x298] sm:$0xff]
        %v927 = vld [vmem:[%s426 + $0x2a0] sm:$0xff]
        %v928 = vld [vmem:[%s426 + $0x2a8] sm:$0xff]
        %v929 = vld [vmem:[%s426 + $0x2b0] sm:$0xff]
        %v930 = vld [vmem:[%s426 + $0x2b8] sm:$0xff]
        %v931 = vld [vmem:[%s426 + $0x2c0] sm:$0xff]
        %v932 = vld [vmem:[%s426 + $0x2c8] sm:$0xff]
        %v933 = vld [vmem:[%s426 + $0x2d0] sm:$0xff]
        %v934 = vld [vmem:[%s426 + $0x2d8] sm:$0xff]
        %v935 = vld [vmem:[%s426 + $0x2e0] sm:$0xff]
        %v936 = vld [vmem:[%s426 + $0x2e8] sm:$0xff]
        %v937 = vld [vmem:[%s426 + $0x2f0] sm:$0xff]
        %v938 = vld [vmem:[%s426 + $0x2f8] sm:$0xff]
        %v939 = vld [vmem:[%s426 + $0x300] sm:$0xff]
        %v940 = vld [vmem:[%s426 + $0x308] sm:$0xff]
        %v941 = vld [vmem:[%s426 + $0x310] sm:$0xff]
        %v942 = vld [vmem:[%s426 + $0x318] sm:$0xff]
        %v943 = vld [vmem:[%s426 + $0x320] sm:$0xff]
        %v944 = vld [vmem:[%s426 + $0x328] sm:$0xff]
        %v945 = vld [vmem:[%s426 + $0x330] sm:$0xff]
        %v946 = vld [vmem:[%s426 + $0x338] sm:$0xff]
        %v947 = vld [vmem:[%s426 + $0x340] sm:$0xff]
        %v948 = vld [vmem:[%s426 + $0x348] sm:$0xff]
        %v949 = vld [vmem:[%s426 + $0x350] sm:$0xff]
        %v950 = vld [vmem:[%s426 + $0x358] sm:$0xff]
        %v951 = vld [vmem:[%s426 + $0x360] sm:$0xff]
        %v952 = vld [vmem:[%s426 + $0x368] sm:$0xff]
        %v953 = vld [vmem:[%s426 + $0x370] sm:$0xff]
        %v954 = vld [vmem:[%s426 + $0x378] sm:$0xff]
        %v955 = vld [vmem:[%s426 + $0x380] sm:$0xff]
        %v956 = vld [vmem:[%s426 + $0x388] sm:$0xff]
        %v957 = vld [vmem:[%s426 + $0x390] sm:$0xff]
        %v958 = vld [vmem:[%s426 + $0x398] sm:$0xff]
        %v959 = vld [vmem:[%s426 + $0x3a0] sm:$0xff]
        %v960 = vld [vmem:[%s426 + $0x3a8] sm:$0xff]
        %v961 = vld [vmem:[%s426 + $0x3b0] sm:$0xff]
        %v962 = vld [vmem:[%s426 + $0x3b8] sm:$0xff]
        %v963 = vld [vmem:[%s426 + $0x3c0] sm:$0xff]
        %v964 = vld [vmem:[%s426 + $0x3c8] sm:$0xff]
        %v965 = vld [vmem:[%s426 + $0x3d0] sm:$0xff]
        %v966 = vld [vmem:[%s426 + $0x3d8] sm:$0xff]
        %v967 = vld [vmem:[%s426 + $0x3e0] sm:$0xff]
        %v968 = vld [vmem:[%s426 + $0x3e8] sm:$0xff]
        %v969 = vld [vmem:[%s426 + $0x3f0] sm:$0xff]
        %v970 = vld [vmem:[%s426 + $0x3f8] sm:$0xff]
        %v971 = vld [vmem:[%s426 + $0x400] sm:$0xff]
        %v972 = vld [vmem:[%s426 + $0x408] sm:$0xff]
        %v973 = vld [vmem:[%s426 + $0x410] sm:$0xff]
        %v974 = vld [vmem:[%s426 + $0x418] sm:$0xff]
        %v975 = vld [vmem:[%s426 + $0x420] sm:$0xff]
        %v976 = vld [vmem:[%s426 + $0x428] sm:$0xff]
        %v977 = vld [vmem:[%s426 + $0x430] sm:$0xff]
        %v978 = vld [vmem:[%s426 + $0x438] sm:$0xff]
        %v979 = vld [vmem:[%s426 + $0x440] sm:$0xff]
        %v980 = vld [vmem:[%s426 + $0x448] sm:$0xff]
        %v981 = vld [vmem:[%s426 + $0x450] sm:$0xff]
        %v982 = vld [vmem:[%s426 + $0x458] sm:$0xff]
        %v983 = vld [vmem:[%s426 + $0x460] sm:$0xff]
        %v984 = vld [vmem:[%s426 + $0x468] sm:$0xff]
        %v985 = vld [vmem:[%s426 + $0x470] sm:$0xff]
        %v986 = vld [vmem:[%s426 + $0x478] sm:$0xff]
        %v987 = vld [vmem:[%s426 + $0x480] sm:$0xff]
        %v988 = vld [vmem:[%s426 + $0x488] sm:$0xff]
        %v989 = vld [vmem:[%s426 + $0x490] sm:$0xff]
        %v990 = vld [vmem:[%s426 + $0x498] sm:$0xff]
        %v991 = vld [vmem:[%s426 + $0x4a0] sm:$0xff]
        %v992 = vld [vmem:[%s426 + $0x4a8] sm:$0xff]
        %v993 = vld [vmem:[%s426 + $0x4b0] sm:$0xff]
        %v994 = vld [vmem:[%s426 + $0x4b8] sm:$0xff]
        %v995 = vld [vmem:[%s426 + $0x4c0] sm:$0xff]
        %v996 = vld [vmem:[%s426 + $0x4c8] sm:$0xff]
        %v997 = vld [vmem:[%s426 + $0x4d0] sm:$0xff]
        %v998 = vld [vmem:[%s426 + $0x4d8] sm:$0xff]
        %v999 = vld [vmem:[%s426 + $0x4e0] sm:$0xff]
        %v1000 = vld [vmem:[%s426 + $0x4e8] sm:$0xff]
        %v1001 = vld [vmem:[%s426 + $0x4f0] sm:$0xff]
        %v1002 = vld [vmem:[%s426 + $0x4f8] sm:$0xff]
        %v1003 = vld [vmem:[%s426 + $0x500] sm:$0xff]
        %v1004 = vld [vmem:[%s426 + $0x508] sm:$0xff]
        %v1005 = vld [vmem:[%s426 + $0x510] sm:$0xff]
        %v1006 = vld [vmem:[%s426 + $0x518] sm:$0xff]
        %v1007 = vld [vmem:[%s426 + $0x520] sm:$0xff]
        %v1008 = vld [vmem:[%s426 + $0x528] sm:$0xff]
        %v1009 = vld [vmem:[%s426 + $0x530] sm:$0xff]
        %v1010 = vld [vmem:[%s426 + $0x538] sm:$0xff]
        %v1011 = vld [vmem:[%s426 + $0x540] sm:$0xff]
        %v1012 = vld [vmem:[%s426 + $0x548] sm:$0xff]
        %v1013 = vld [vmem:[%s426 + $0x550] sm:$0xff]
        %v1014 = vld [vmem:[%s426 + $0x558] sm:$0xff]
        %v1015 = vld [vmem:[%s426 + $0x560] sm:$0xff]
        %v1016 = vld [vmem:[%s426 + $0x568] sm:$0xff]
        %v1017 = vld [vmem:[%s426 + $0x570] sm:$0xff]
        %v1018 = vld [vmem:[%s426 + $0x578] sm:$0xff]
        %v1019 = vld [vmem:[%s426 + $0x580] sm:$0xff]
        %v1020 = vld [vmem:[%s426 + $0x588] sm:$0xff]
        %v1021 = vld [vmem:[%s426 + $0x590] sm:$0xff]
        %v1022 = vld [vmem:[%s426 + $0x598] sm:$0xff]
        %v1023 = vld [vmem:[%s426 + $0x5a0] sm:$0xff]
        %v1024 = vld [vmem:[%s426 + $0x5a8] sm:$0xff]
        %v1025 = vld [vmem:[%s426 + $0x5b0] sm:$0xff]
        %v1026 = vld [vmem:[%s426 + $0x5b8] sm:$0xff]
        %v1027 = vld [vmem:[%s426 + $0x5c0] sm:$0xff]
        %v1028 = vld [vmem:[%s426 + $0x5c8] sm:$0xff]
        %v1029 = vld [vmem:[%s426 + $0x5d0] sm:$0xff]
        %v1030 = vld [vmem:[%s426 + $0x5d8] sm:$0xff]
        %v1031 = vld [vmem:[%s426 + $0x5e0] sm:$0xff]
        %v1032 = vld [vmem:[%s426 + $0x5e8] sm:$0xff]
        %v1033 = vld [vmem:[%s426 + $0x5f0] sm:$0xff]
        %v1034 = vld [vmem:[%s426 + $0x5f8] sm:$0xff]
        %v1035 = vld [vmem:[%s426 + $0x600] sm:$0xff]
        %v1036 = vld [vmem:[%s426 + $0x608] sm:$0xff]
        %v1037 = vld [vmem:[%s426 + $0x610] sm:$0xff]
        %v1038 = vld [vmem:[%s426 + $0x618] sm:$0xff]
        %v1039 = vld [vmem:[%s426 + $0x620] sm:$0xff]
        %v1040 = vld [vmem:[%s426 + $0x628] sm:$0xff]
        %v1041 = vld [vmem:[%s426 + $0x630] sm:$0xff]
        %v1042 = vld [vmem:[%s426 + $0x638] sm:$0xff]
        %v1043 = vld [vmem:[%s426 + $0x640] sm:$0xff]
        %v1044 = vld [vmem:[%s426 + $0x648] sm:$0xff]
        %v1045 = vld [vmem:[%s426 + $0x650] sm:$0xff]
        %v1046 = vld [vmem:[%s426 + $0x658] sm:$0xff]
        %v1047 = vld [vmem:[%s426 + $0x660] sm:$0xff]
        %v1048 = vld [vmem:[%s426 + $0x668] sm:$0xff]
        %v1049 = vld [vmem:[%s426 + $0x670] sm:$0xff]
        %v1050 = vld [vmem:[%s426 + $0x678] sm:$0xff]
        %v1051 = vld [vmem:[%s426 + $0x680] sm:$0xff]
        %v1052 = vld [vmem:[%s426 + $0x688] sm:$0xff]
        %v1053 = vld [vmem:[%s426 + $0x690] sm:$0xff]
        %v1054 = vld [vmem:[%s426 + $0x698] sm:$0xff]
        %v1055 = vld [vmem:[%s426 + $0x6a0] sm:$0xff]
        %v1056 = vld [vmem:[%s426 + $0x6a8] sm:$0xff]
        %v1057 = vld [vmem:[%s426 + $0x6b0] sm:$0xff]
        %v1058 = vld [vmem:[%s426 + $0x6b8] sm:$0xff]
        %v1059 = vld [vmem:[%s426 + $0x6c0] sm:$0xff]
        %v1060 = vld [vmem:[%s426 + $0x6c8] sm:$0xff]
        %v1061 = vld [vmem:[%s426 + $0x6d0] sm:$0xff]
        %v1062 = vld [vmem:[%s426 + $0x6d8] sm:$0xff]
        %v1063 = vld [vmem:[%s426 + $0x6e0] sm:$0xff]
        %v1064 = vld [vmem:[%s426 + $0x6e8] sm:$0xff]
        %v1065 = vld [vmem:[%s426 + $0x6f0] sm:$0xff]
        %v1066 = vld [vmem:[%s426 + $0x6f8] sm:$0xff]
        %v1067 = vld [vmem:[%s426 + $0x700] sm:$0xff]
        %v1068 = vld [vmem:[%s426 + $0x708] sm:$0xff]
        %v1069 = vld [vmem:[%s426 + $0x710] sm:$0xff]
        %v1070 = vld [vmem:[%s426 + $0x718] sm:$0xff]
        %v1071 = vld [vmem:[%s426 + $0x720] sm:$0xff]
        %v1072 = vld [vmem:[%s426 + $0x728] sm:$0xff]
        %v1073 = vld [vmem:[%s426 + $0x730] sm:$0xff]
        %v1074 = vld [vmem:[%s426 + $0x738] sm:$0xff]
        %v1075 = vld [vmem:[%s426 + $0x740] sm:$0xff]
        %v1076 = vld [vmem:[%s426 + $0x748] sm:$0xff]
        %v1077 = vld [vmem:[%s426 + $0x750] sm:$0xff]
        %v1078 = vld [vmem:[%s426 + $0x758] sm:$0xff]
        %v1079 = vld [vmem:[%s426 + $0x760] sm:$0xff]
        %v1080 = vld [vmem:[%s426 + $0x768] sm:$0xff]
        %v1081 = vld [vmem:[%s426 + $0x770] sm:$0xff]
        %v1082 = vld [vmem:[%s426 + $0x778] sm:$0xff]
        %v1083 = vld [vmem:[%s426 + $0x780] sm:$0xff]
        %v1084 = vld [vmem:[%s426 + $0x788] sm:$0xff]
        %v1085 = vld [vmem:[%s426 + $0x790] sm:$0xff]
        %v1086 = vld [vmem:[%s426 + $0x798] sm:$0xff]
        %v1087 = vld [vmem:[%s426 + $0x7a0] sm:$0xff]
        %v1088 = vld [vmem:[%s426 + $0x7a8] sm:$0xff]
        %v1089 = vld [vmem:[%s426 + $0x7b0] sm:$0xff]
        %v1090 = vld [vmem:[%s426 + $0x7b8] sm:$0xff]
        %v1091 = vld [vmem:[%s426 + $0x7c0] sm:$0xff]
        %v1092 = vld [vmem:[%s426 + $0x7c8] sm:$0xff]
        %v1093 = vld [vmem:[%s426 + $0x7d0] sm:$0xff]
        %v1094 = vld [vmem:[%s426 + $0x7d8] sm:$0xff]
        %v1095 = vld [vmem:[%s426 + $0x7e0] sm:$0xff]
        %v1096 = vld [vmem:[%s426 + $0x7e8] sm:$0xff]
        %v1097 = vld [vmem:[%s426 + $0x7f0] sm:$0xff]
        %v1098 = vld [vmem:[%s426 + $0x7f8] sm:$0xff]
        %v1099 = vld [vmem:[%s426 + $0x800] sm:$0xff]
        %v1100 = vld [vmem:[%s426 + $0x808] sm:$0xff]
        %v1101 = vld [vmem:[%s426 + $0x810] sm:$0xff]
        %v1102 = vld [vmem:[%s426 + $0x818] sm:$0xff]
        %v1103 = vld [vmem:[%s426 + $0x820] sm:$0xff]
        %v1104 = vld [vmem:[%s426 + $0x828] sm:$0xff]
        %v1105 = vld [vmem:[%s426 + $0x830] sm:$0xff]
        %v1106 = vld [vmem:[%s426 + $0x838] sm:$0xff]
        %v1107 = vld [vmem:[%s426 + $0x840] sm:$0xff]
        %v1108 = vld [vmem:[%s426 + $0x848] sm:$0xff]
        %v1109 = vld [vmem:[%s426 + $0x850] sm:$0xff]
        %v1110 = vld [vmem:[%s426 + $0x858] sm:$0xff]
        %v1111 = vld [vmem:[%s426 + $0x860] sm:$0xff]
        %v1112 = vld [vmem:[%s426 + $0x868] sm:$0xff]
        %v1113 = vld [vmem:[%s426 + $0x870] sm:$0xff]
        %v1114 = vld [vmem:[%s426 + $0x878] sm:$0xff]
        %v1115 = vld [vmem:[%s426 + $0x880] sm:$0xff]
        %v1116 = vld [vmem:[%s426 + $0x888] sm:$0xff]
        %v1117 = vld [vmem:[%s426 + $0x890] sm:$0xff]
        %v1118 = vld [vmem:[%s426 + $0x898] sm:$0xff]
        %v1119 = vld [vmem:[%s426 + $0x8a0] sm:$0xff]
        %v1120 = vld [vmem:[%s426 + $0x8a8] sm:$0xff]
        %v1121 = vld [vmem:[%s426 + $0x8b0] sm:$0xff]
        %v1122 = vld [vmem:[%s426 + $0x8b8] sm:$0xff]
        %v1123 = vld [vmem:[%s426 + $0x8c0] sm:$0xff]
        %v1124 = vld [vmem:[%s426 + $0x8c8] sm:$0xff]
        %v1125 = vld [vmem:[%s426 + $0x8d0] sm:$0xff]
        %v1126 = vld [vmem:[%s426 + $0x8d8] sm:$0xff]
        %v1127 = vld [vmem:[%s426 + $0x8e0] sm:$0xff]
        %v1128 = vld [vmem:[%s426 + $0x8e8] sm:$0xff]
        %v1129 = vld [vmem:[%s426 + $0x8f0] sm:$0xff]
        %v1130 = vld [vmem:[%s426 + $0x8f8] sm:$0xff]
        %v1131 = vld [vmem:[%s426 + $0x900] sm:$0xff]
        %v1132 = vld [vmem:[%s426 + $0x908] sm:$0xff]
        %v1133 = vld [vmem:[%s426 + $0x910] sm:$0xff]
        %v1134 = vld [vmem:[%s426 + $0x918] sm:$0xff]
        %v1135 = vld [vmem:[%s426 + $0x920] sm:$0xff]
        %v1136 = vld [vmem:[%s426 + $0x928] sm:$0xff]
        %v1137 = vld [vmem:[%s426 + $0x930] sm:$0xff]
        %v1138 = vld [vmem:[%s426 + $0x938] sm:$0xff]
        %v1139 = vld [vmem:[%s426 + $0x940] sm:$0xff]
        %v1140 = vld [vmem:[%s426 + $0x948] sm:$0xff]
        %v1141 = vld [vmem:[%s426 + $0x950] sm:$0xff]
        %v1142 = vld [vmem:[%s426 + $0x958] sm:$0xff]
        %v1143 = vld [vmem:[%s426 + $0x960] sm:$0xff]
        %v1144 = vld [vmem:[%s426 + $0x968] sm:$0xff]
        %v1145 = vld [vmem:[%s426 + $0x970] sm:$0xff]
        %v1146 = vld [vmem:[%s426 + $0x978] sm:$0xff]
        %v1147 = vld [vmem:[%s426 + $0x980] sm:$0xff]
        %v1148 = vld [vmem:[%s426 + $0x988] sm:$0xff]
        %v1149 = vld [vmem:[%s426 + $0x990] sm:$0xff]
        %v1150 = vld [vmem:[%s426 + $0x998] sm:$0xff]
        %v1151 = vld [vmem:[%s426 + $0x9a0] sm:$0xff]
        %v1152 = vld [vmem:[%s426 + $0x9a8] sm:$0xff]
        %v1153 = vld [vmem:[%s426 + $0x9b0] sm:$0xff]
        %v1154 = vld [vmem:[%s426 + $0x9b8] sm:$0xff]
        %v1155 = vld [vmem:[%s426 + $0x9c0] sm:$0xff]
        %v1156 = vld [vmem:[%s426 + $0x9c8] sm:$0xff]
        %v1157 = vld [vmem:[%s426 + $0x9d0] sm:$0xff]
        %v1158 = vld [vmem:[%s426 + $0x9d8] sm:$0xff]
        %v1159 = vld [vmem:[%s426 + $0x9e0] sm:$0xff]
        %v1160 = vld [vmem:[%s426 + $0x9e8] sm:$0xff]
        %v1161 = vld [vmem:[%s426 + $0x9f0] sm:$0xff]
        %v1162 = vld [vmem:[%s426 + $0x9f8] sm:$0xff]
        %v1163 = vld [vmem:[%s426 + $0xa00] sm:$0xff]
        %v1164 = vld [vmem:[%s426 + $0xa08] sm:$0xff]
        %v1165 = vld [vmem:[%s426 + $0xa10] sm:$0xff]
        %v1166 = vld [vmem:[%s426 + $0xa18] sm:$0xff]
        %v1167 = vld [vmem:[%s426 + $0xa20] sm:$0xff]
        %v1168 = vld [vmem:[%s426 + $0xa28] sm:$0xff]
        %v1169 = vld [vmem:[%s426 + $0xa30] sm:$0xff]
        %v1170 = vld [vmem:[%s426 + $0xa38] sm:$0xff]
        %v1171 = vld [vmem:[%s426 + $0xa40] sm:$0xff]
        %v1172 = vld [vmem:[%s426 + $0xa48] sm:$0xff]
        %v1173 = vld [vmem:[%s426 + $0xa50] sm:$0xff]
        %v1174 = vld [vmem:[%s426 + $0xa58] sm:$0xff]
        %v1175 = vld [vmem:[%s426 + $0xa60] sm:$0xff]
        %v1176 = vld [vmem:[%s426 + $0xa68] sm:$0xff]
        %v1177 = vld [vmem:[%s426 + $0xa70] sm:$0xff]
        %v1178 = vld [vmem:[%s426 + $0xa78] sm:$0xff]
        %v1179 = vld [vmem:[%s426 + $0xa80] sm:$0xff]
        %v1180 = vld [vmem:[%s426 + $0xa88] sm:$0xff]
        %v1181 = vld [vmem:[%s426 + $0xa90] sm:$0xff]
        %v1182 = vld [vmem:[%s426 + $0xa98] sm:$0xff]
        %v1183 = vld [vmem:[%s426 + $0xaa0] sm:$0xff]
        %v1184 = vld [vmem:[%s426 + $0xaa8] sm:$0xff]
        %v1185 = vld [vmem:[%s426 + $0xab0] sm:$0xff]
        %v1186 = vld [vmem:[%s426 + $0xab8] sm:$0xff]
        %v1187 = vld [vmem:[%s426 + $0xac0] sm:$0xff]
        %v1188 = vld [vmem:[%s426 + $0xac8] sm:$0xff]
        %v1189 = vld [vmem:[%s426 + $0xad0] sm:$0xff]
        %v1190 = vld [vmem:[%s426 + $0xad8] sm:$0xff]
        %v1191 = vld [vmem:[%s426 + $0xae0] sm:$0xff]
        %v1192 = vld [vmem:[%s426 + $0xae8] sm:$0xff]
        %v1193 = vld [vmem:[%s426 + $0xaf0] sm:$0xff]
        %v1194 = vld [vmem:[%s426 + $0xaf8] sm:$0xff]
        %v1195 = vld [vmem:[%s426 + $0xb00] sm:$0xff]
        %v1196 = vld [vmem:[%s426 + $0xb08] sm:$0xff]
        %v1197 = vld [vmem:[%s426 + $0xb10] sm:$0xff]
        %v1198 = vld [vmem:[%s426 + $0xb18] sm:$0xff]
        %v1199 = vld [vmem:[%s426 + $0xb20] sm:$0xff]
        %v1200 = vld [vmem:[%s426 + $0xb28] sm:$0xff]
        %v1201 = vld [vmem:[%s426 + $0xb30] sm:$0xff]
        %v1202 = vld [vmem:[%s426 + $0xb38] sm:$0xff]
        %v1203 = vld [vmem:[%s426 + $0xb40] sm:$0xff]
        %v1204 = vld [vmem:[%s426 + $0xb48] sm:$0xff]
        %v1205 = vld [vmem:[%s426 + $0xb50] sm:$0xff]
        %v1206 = vld [vmem:[%s426 + $0xb58] sm:$0xff]
        %v1207 = vld [vmem:[%s426 + $0xb60] sm:$0xff]
        %v1208 = vld [vmem:[%s426 + $0xb68] sm:$0xff]
        %v1209 = vld [vmem:[%s426 + $0xb70] sm:$0xff]
        %v1210 = vld [vmem:[%s426 + $0xb78] sm:$0xff]
        %v1211 = vld [vmem:[%s426 + $0xb80] sm:$0xff]
        %v1212 = vld [vmem:[%s426 + $0xb88] sm:$0xff]
        %v1213 = vld [vmem:[%s426 + $0xb90] sm:$0xff]
        %v1214 = vld [vmem:[%s426 + $0xb98] sm:$0xff]
        %v1215 = vld [vmem:[%s426 + $0xba0] sm:$0xff]
        %v1216 = vld [vmem:[%s426 + $0xba8] sm:$0xff]
        %v1217 = vld [vmem:[%s426 + $0xbb0] sm:$0xff]
        %v1218 = vld [vmem:[%s426 + $0xbb8] sm:$0xff]
        %v1219 = vld [vmem:[%s426 + $0xbc0] sm:$0xff]
        %v1220 = vld [vmem:[%s426 + $0xbc8] sm:$0xff]
        %v1221 = vld [vmem:[%s426 + $0xbd0] sm:$0xff]
        %v1222 = vld [vmem:[%s426 + $0xbd8] sm:$0xff]
        %v1223 = vld [vmem:[%s426 + $0xbe0] sm:$0xff]
        %v1224 = vld [vmem:[%s426 + $0xbe8] sm:$0xff]
        %v1225 = vld [vmem:[%s426 + $0xbf0] sm:$0xff]
        %v1226 = vld [vmem:[%s426 + $0xbf8] sm:$0xff]
        %v1227 = vld [vmem:[%s444] sm:$0x3f]
        %v1229 = vlaneseq
        %v1230 = vshrl.u32 %v1229, 7
        %v1231 = vsub.s32 0, %v1230
        %v1232 = vrot.slane %v1227, %v1231
        %v1233 = vlaneseq
        %v1234 = vshrl.u32 %v1233, 7
        %v1235 = vsub.s32 1, %v1234
        %v1236 = vrot.slane %v1227, %v1235
        %v1237 = vlaneseq
        %v1238 = vshrl.u32 %v1237, 7
        %v1239 = vsub.s32 2, %v1238
        %v1240 = vrot.slane %v1227, %v1239
        %v1241 = vlaneseq
        %v1242 = vshrl.u32 %v1241, 7
        %v1243 = vsub.s32 3, %v1242
        %v1244 = vrot.slane %v1227, %v1243
        %v1245 = vlaneseq
        %v1246 = vshrl.u32 %v1245, 7
        %v1247 = vsub.s32 4, %v1246
        %v1248 = vrot.slane %v1227, %v1247
        %v1249 = vlaneseq
        %v1250 = vshrl.u32 %v1249, 7
        %v1251 = vsub.s32 5, %v1250
        %v1252 = vrot.slane %v1227, %v1251
        %1259 = vmatprep.subr.mxu0 %v934
        %1260 = vmatpush1.msra.mxu0 %v933
        %1261 = vmatprep.subr.mxu0 %v928
        %1262 = vmatpush1.msra.mxu0 %v927
        %1263 = vmatprep.subr.mxu0 %v922
        %1264 = vmatpush1.msra.mxu0 %v921
        %1265 = vmatprep.subr.mxu0 %v916
        %1266 = vmatpush1.msra.mxu0 %v915
        %1267 = vmatprep.subr.mxu0 %v910
        %1268 = vmatpush1.msra.mxu0 %v909
        %1269 = vmatprep.subr.mxu0 %v904
        %1270 = vmatpush1.msra.mxu0 %v903
        %1271 = vmatprep.subr.mxu0 %v898
        %1272 = vmatpush1.msra.mxu0 %v897
        %1273 = vmatprep.subr.mxu0 %v892
        %1274 = vmatpush1.msra.mxu0 %v891
        %1275 = vmatprep.subr.mxu0 %v886
        %1276 = vmatpush1.msra.mxu0 %v885
        %1277 = vmatprep.subr.mxu0 %v880
        %1278 = vmatpush1.msra.mxu0 %v879
        %1279 = vmatprep.subr.mxu0 %v874
        %1280 = vmatpush1.msra.mxu0 %v873
        %1281 = vmatprep.subr.mxu0 %v868
        %1282 = vmatpush1.msra.mxu0 %v867
        %1283 = vmatprep.subr.mxu0 %v862
        %1284 = vmatpush1.msra.mxu0 %v861
        %1285 = vmatprep.subr.mxu0 %v856
        %1286 = vmatpush1.msra.mxu0 %v855
        %1287 = vmatprep.subr.mxu0 %v850
        %1288 = vmatpush1.msra.mxu0 %v849
        %1289 = vmatprep.subr.mxu0 %v844
        %1290 = vmatpush1.msra.mxu0 %v843
        %1291 = vmatprep.subr.mxu0 %v1030
        %1292 = vmatpush2.msra.mxu0 %v1029
        %1293 = vmatprep.subr.mxu0 %v1024
        %1294 = vmatpush2.msra.mxu0 %v1023
        %1295 = vmatprep.subr.mxu0 %v1018
        %1296 = vmatpush2.msra.mxu0 %v1017
        %1297 = vmatprep.subr.mxu0 %v1012
        %1298 = vmatpush2.msra.mxu0 %v1011
        %1299 = vmatprep.subr.mxu0 %v1006
        %1300 = vmatpush2.msra.mxu0 %v1005
        %1301 = vmatprep.subr.mxu0 %v1000
        %1302 = vmatpush2.msra.mxu0 %v999
        %1303 = vmatprep.subr.mxu0 %v994
        %1304 = vmatpush2.msra.mxu0 %v993
        %1305 = vmatprep.subr.mxu0 %v988
        %1306 = vmatpush2.msra.mxu0 %v987
        %1307 = vmatprep.subr.mxu0 %v982
        %1308 = vmatpush2.msra.mxu0 %v981
        %1309 = vmatprep.subr.mxu0 %v976
        %1310 = vmatpush2.msra.mxu0 %v975
        %1311 = vmatprep.subr.mxu0 %v970
        %1312 = vmatpush2.msra.mxu0 %v969
        %1313 = vmatprep.subr.mxu0 %v964
        %1314 = vmatpush2.msra.mxu0 %v963
        %1315 = vmatprep.subr.mxu0 %v958
        %1316 = vmatpush2.msra.mxu0 %v957
        %1317 = vmatprep.subr.mxu0 %v952
        %1318 = vmatpush2.msra.mxu0 %v951
        %1319 = vmatprep.subr.mxu0 %v946
        %1320 = vmatpush2.msra.mxu0 %v945
        %1321 = vmatprep.subr.mxu0 %v940
        %1322 = vmatpush2.msra.mxu0 %v939
        %1323 = vmatprep.mubr.f32.mxu0 %v499
        %1324 = vmatmul.mubr.f32.gmra.mxu0 %v498
        %v1325 = vpop.f32.mrf.mxu0
        %v1326 = vadd.f32 %v1232, %v1325
        %v1327 = vpop.f32.mrf.mxu0
        %v1328 = vadd.f32 %v1236, %v1327
        %1329 = vdwg.mxu0
        %1330 = vmatprep.subr.mxu0 %v1126
        %1331 = vmatpush1.msra.mxu0 %v1125
        %1332 = vmatprep.subr.mxu0 %v1120
        %1333 = vmatpush1.msra.mxu0 %v1119
        %1334 = vmatprep.subr.mxu0 %v1114
        %1335 = vmatpush1.msra.mxu0 %v1113
        %1336 = vmatprep.subr.mxu0 %v1108
        %1337 = vmatpush1.msra.mxu0 %v1107
        %1338 = vmatprep.subr.mxu0 %v1102
        %1339 = vmatpush1.msra.mxu0 %v1101
        %1340 = vmatprep.subr.mxu0 %v1096
        %1341 = vmatpush1.msra.mxu0 %v1095
        %1342 = vmatprep.subr.mxu0 %v1090
        %1343 = vmatpush1.msra.mxu0 %v1089
        %1344 = vmatprep.subr.mxu0 %v1084
        %1345 = vmatpush1.msra.mxu0 %v1083
        %1346 = vmatprep.subr.mxu0 %v1078
        %1347 = vmatpush1.msra.mxu0 %v1077
        %1348 = vmatprep.subr.mxu0 %v1072
        %1349 = vmatpush1.msra.mxu0 %v1071
        %1350 = vmatprep.subr.mxu0 %v1066
        %1351 = vmatpush1.msra.mxu0 %v1065
        %1352 = vmatprep.subr.mxu0 %v1060
        %1353 = vmatpush1.msra.mxu0 %v1059
        %1354 = vmatprep.subr.mxu0 %v1054
        %1355 = vmatpush1.msra.mxu0 %v1053
        %1356 = vmatprep.subr.mxu0 %v1048
        %1357 = vmatpush1.msra.mxu0 %v1047
        %1358 = vmatprep.subr.mxu0 %v1042
        %1359 = vmatpush1.msra.mxu0 %v1041
        %1360 = vmatprep.subr.mxu0 %v1036
        %1361 = vmatpush1.msra.mxu0 %v1035
        %1362 = vmatprep.subr.mxu0 %v1222
        %1363 = vmatpush2.msra.mxu0 %v1221
        %1364 = vmatprep.subr.mxu0 %v1216
        %1365 = vmatpush2.msra.mxu0 %v1215
        %1366 = vmatprep.subr.mxu0 %v1210
        %1367 = vmatpush2.msra.mxu0 %v1209
        %1368 = vmatprep.subr.mxu0 %v1204
        %1369 = vmatpush2.msra.mxu0 %v1203
        %1370 = vmatprep.subr.mxu0 %v1198
        %1371 = vmatpush2.msra.mxu0 %v1197
        %1372 = vmatprep.subr.mxu0 %v1192
        %1373 = vmatpush2.msra.mxu0 %v1191
        %1374 = vmatprep.subr.mxu0 %v1186
        %1375 = vmatpush2.msra.mxu0 %v1185
        %1376 = vmatprep.subr.mxu0 %v1180
        %1377 = vmatpush2.msra.mxu0 %v1179
        %1378 = vmatprep.subr.mxu0 %v1174
        %1379 = vmatpush2.msra.mxu0 %v1173
        %1380 = vmatprep.subr.mxu0 %v1168
        %1381 = vmatpush2.msra.mxu0 %v1167
        %1382 = vmatprep.subr.mxu0 %v1162
        %1383 = vmatpush2.msra.mxu0 %v1161
        %1384 = vmatprep.subr.mxu0 %v1156
        %1385 = vmatpush2.msra.mxu0 %v1155
        %1386 = vmatprep.subr.mxu0 %v1150
        %1387 = vmatpush2.msra.mxu0 %v1149
        %1388 = vmatprep.subr.mxu0 %v1144
        %1389 = vmatpush2.msra.mxu0 %v1143
        %1390 = vmatprep.subr.mxu0 %v1138
        %1391 = vmatpush2.msra.mxu0 %v1137
        %1392 = vmatprep.subr.mxu0 %v1132
        %1393 = vmatpush2.msra.mxu0 %v1131
        %1394 = vmatprep.mubr.f32.mxu0 %v501
        %1395 = vmatmul.mubr.f32.gmra.mxu0 %v500
        %v1396 = vpop.f32.mrf.mxu0
        %v1397 = vadd.f32 %v1326, %v1396
        %v1398 = vpop.f32.mrf.mxu0
        %v1399 = vadd.f32 %v1328, %v1398
        %1400 = vdwg.mxu0
        %1401 = vmatprep.subr.mxu0 %v936
        %1402 = vmatpush1.msra.mxu0 %v935
        %1403 = vmatprep.subr.mxu0 %v930
        %1404 = vmatpush1.msra.mxu0 %v929
        %1405 = vmatprep.subr.mxu0 %v924
        %1406 = vmatpush1.msra.mxu0 %v923
        %1407 = vmatprep.subr.mxu0 %v918
        %1408 = vmatpush1.msra.mxu0 %v917
        %1409 = vmatprep.subr.mxu0 %v912
        %1410 = vmatpush1.msra.mxu0 %v911
        %1411 = vmatprep.subr.mxu0 %v906
        %1412 = vmatpush1.msra.mxu0 %v905
        %1413 = vmatprep.subr.mxu0 %v900
        %1414 = vmatpush1.msra.mxu0 %v899
        %1415 = vmatprep.subr.mxu0 %v894
        %1416 = vmatpush1.msra.mxu0 %v893
        %1417 = vmatprep.subr.mxu0 %v888
        %1418 = vmatpush1.msra.mxu0 %v887
        %1419 = vmatprep.subr.mxu0 %v882
        %1420 = vmatpush1.msra.mxu0 %v881
        %1421 = vmatprep.subr.mxu0 %v876
        %1422 = vmatpush1.msra.mxu0 %v875
        %1423 = vmatprep.subr.mxu0 %v870
        %1424 = vmatpush1.msra.mxu0 %v869
        %1425 = vmatprep.subr.mxu0 %v864
        %1426 = vmatpush1.msra.mxu0 %v863
        %1427 = vmatprep.subr.mxu0 %v858
        %1428 = vmatpush1.msra.mxu0 %v857
        %1429 = vmatprep.subr.mxu0 %v852
        %1430 = vmatpush1.msra.mxu0 %v851
        %1431 = vmatprep.subr.mxu0 %v846
        %1432 = vmatpush1.msra.mxu0 %v845
        %1433 = vmatprep.subr.mxu0 %v1032
        %1434 = vmatpush2.msra.mxu0 %v1031
        %1435 = vmatprep.subr.mxu0 %v1026
        %1436 = vmatpush2.msra.mxu0 %v1025
        %1437 = vmatprep.subr.mxu0 %v1020
        %1438 = vmatpush2.msra.mxu0 %v1019
        %1439 = vmatprep.subr.mxu0 %v1014
        %1440 = vmatpush2.msra.mxu0 %v1013
        %1441 = vmatprep.subr.mxu0 %v1008
        %1442 = vmatpush2.msra.mxu0 %v1007
        %1443 = vmatprep.subr.mxu0 %v1002
        %1444 = vmatpush2.msra.mxu0 %v1001
        %1445 = vmatprep.subr.mxu0 %v996
        %1446 = vmatpush2.msra.mxu0 %v995
        %1447 = vmatprep.subr.mxu0 %v990
        %1448 = vmatpush2.msra.mxu0 %v989
        %1449 = vmatprep.subr.mxu0 %v984
        %1450 = vmatpush2.msra.mxu0 %v983
        %1451 = vmatprep.subr.mxu0 %v978
        %1452 = vmatpush2.msra.mxu0 %v977
        %1453 = vmatprep.subr.mxu0 %v972
        %1454 = vmatpush2.msra.mxu0 %v971
        %1455 = vmatprep.subr.mxu0 %v966
        %1456 = vmatpush2.msra.mxu0 %v965
        %1457 = vmatprep.subr.mxu0 %v960
        %1458 = vmatpush2.msra.mxu0 %v959
        %1459 = vmatprep.subr.mxu0 %v954
        %1460 = vmatpush2.msra.mxu0 %v953
        %1461 = vmatprep.subr.mxu0 %v948
        %1462 = vmatpush2.msra.mxu0 %v947
        %1463 = vmatprep.subr.mxu0 %v942
        %1464 = vmatpush2.msra.mxu0 %v941
        %1465 = vmatprep.mubr.f32.mxu0 %v499
        %1466 = vmatmul.mubr.f32.gmra.mxu0 %v498
        %v1467 = vpop.f32.mrf.mxu0
        %v1468 = vadd.f32 %v1240, %v1467
        %v1469 = vpop.f32.mrf.mxu0
        %v1470 = vadd.f32 %v1244, %v1469
        %1471 = vdwg.mxu0
        %1472 = vmatprep.subr.mxu0 %v1128
        %1473 = vmatpush1.msra.mxu0 %v1127
        %1474 = vmatprep.subr.mxu0 %v1122
        %1475 = vmatpush1.msra.mxu0 %v1121
        %1476 = vmatprep.subr.mxu0 %v1116
        %1477 = vmatpush1.msra.mxu0 %v1115
        %1478 = vmatprep.subr.mxu0 %v1110
        %1479 = vmatpush1.msra.mxu0 %v1109
        %1480 = vmatprep.subr.mxu0 %v1104
        %1481 = vmatpush1.msra.mxu0 %v1103
        %1482 = vmatprep.subr.mxu0 %v1098
        %1483 = vmatpush1.msra.mxu0 %v1097
        %1484 = vmatprep.subr.mxu0 %v1092
        %1485 = vmatpush1.msra.mxu0 %v1091
        %1486 = vmatprep.subr.mxu0 %v1086
        %1487 = vmatpush1.msra.mxu0 %v1085
        %1488 = vmatprep.subr.mxu0 %v1080
        %1489 = vmatpush1.msra.mxu0 %v1079
        %1490 = vmatprep.subr.mxu0 %v1074
        %1491 = vmatpush1.msra.mxu0 %v1073
        %1492 = vmatprep.subr.mxu0 %v1068
        %1493 = vmatpush1.msra.mxu0 %v1067
        %1494 = vmatprep.subr.mxu0 %v1062
        %1495 = vmatpush1.msra.mxu0 %v1061
        %1496 = vmatprep.subr.mxu0 %v1056
        %1497 = vmatpush1.msra.mxu0 %v1055
        %1498 = vmatprep.subr.mxu0 %v1050
        %1499 = vmatpush1.msra.mxu0 %v1049
        %1500 = vmatprep.subr.mxu0 %v1044
        %1501 = vmatpush1.msra.mxu0 %v1043
        %1502 = vmatprep.subr.mxu0 %v1038
        %1503 = vmatpush1.msra.mxu0 %v1037
        %1504 = vmatprep.subr.mxu0 %v1224
        %1505 = vmatpush2.msra.mxu0 %v1223
        %1506 = vmatprep.subr.mxu0 %v1218
        %1507 = vmatpush2.msra.mxu0 %v1217
        %1508 = vmatprep.subr.mxu0 %v1212
        %1509 = vmatpush2.msra.mxu0 %v1211
        %1510 = vmatprep.subr.mxu0 %v1206
        %1511 = vmatpush2.msra.mxu0 %v1205
        %1512 = vmatprep.subr.mxu0 %v1200
        %1513 = vmatpush2.msra.mxu0 %v1199
        %1514 = vmatprep.subr.mxu0 %v1194
        %1515 = vmatpush2.msra.mxu0 %v1193
        %1516 = vmatprep.subr.mxu0 %v1188
        %1517 = vmatpush2.msra.mxu0 %v1187
        %1518 = vmatprep.subr.mxu0 %v1182
        %1519 = vmatpush2.msra.mxu0 %v1181
        %1520 = vmatprep.subr.mxu0 %v1176
        %1521 = vmatpush2.msra.mxu0 %v1175
        %1522 = vmatprep.subr.mxu0 %v1170
        %1523 = vmatpush2.msra.mxu0 %v1169
        %1524 = vmatprep.subr.mxu0 %v1164
        %1525 = vmatpush2.msra.mxu0 %v1163
        %1526 = vmatprep.subr.mxu0 %v1158
        %1527 = vmatpush2.msra.mxu0 %v1157
        %1528 = vmatprep.subr.mxu0 %v1152
        %1529 = vmatpush2.msra.mxu0 %v1151
        %1530 = vmatprep.subr.mxu0 %v1146
        %1531 = vmatpush2.msra.mxu0 %v1145
        %1532 = vmatprep.subr.mxu0 %v1140
        %1533 = vmatpush2.msra.mxu0 %v1139
        %1534 = vmatprep.subr.mxu0 %v1134
        %1535 = vmatpush2.msra.mxu0 %v1133
        %1536 = vmatprep.mubr.f32.mxu0 %v501
        %1537 = vmatmul.mubr.f32.gmra.mxu0 %v500
        %v1538 = vpop.f32.mrf.mxu0
        %v1539 = vadd.f32 %v1468, %v1538
        %v1540 = vpop.f32.mrf.mxu0
        %v1541 = vadd.f32 %v1470, %v1540
        %1542 = vdwg.mxu0
        %1543 = vmatprep.subr.mxu0 %v938
        %1544 = vmatpush1.msra.mxu0 %v937
        %1545 = vmatprep.subr.mxu0 %v932
        %1546 = vmatpush1.msra.mxu0 %v931
        %1547 = vmatprep.subr.mxu0 %v926
        %1548 = vmatpush1.msra.mxu0 %v925
        %1549 = vmatprep.subr.mxu0 %v920
        %1550 = vmatpush1.msra.mxu0 %v919
        %1551 = vmatprep.subr.mxu0 %v914
        %1552 = vmatpush1.msra.mxu0 %v913
        %1553 = vmatprep.subr.mxu0 %v908
        %1554 = vmatpush1.msra.mxu0 %v907
        %1555 = vmatprep.subr.mxu0 %v902
        %1556 = vmatpush1.msra.mxu0 %v901
        %1557 = vmatprep.subr.mxu0 %v896
        %1558 = vmatpush1.msra.mxu0 %v895
        %1559 = vmatprep.subr.mxu0 %v890
        %1560 = vmatpush1.msra.mxu0 %v889
        %1561 = vmatprep.subr.mxu0 %v884
        %1562 = vmatpush1.msra.mxu0 %v883
        %1563 = vmatprep.subr.mxu0 %v878
        %1564 = vmatpush1.msra.mxu0 %v877
        %1565 = vmatprep.subr.mxu0 %v872
        %1566 = vmatpush1.msra.mxu0 %v871
        %1567 = vmatprep.subr.mxu0 %v866
        %1568 = vmatpush1.msra.mxu0 %v865
        %1569 = vmatprep.subr.mxu0 %v860
        %1570 = vmatpush1.msra.mxu0 %v859
        %1571 = vmatprep.subr.mxu0 %v854
        %1572 = vmatpush1.msra.mxu0 %v853
        %1573 = vmatprep.subr.mxu0 %v848
        %1574 = vmatpush1.msra.mxu0 %v847
        %1575 = vmatprep.subr.mxu0 %v1034
        %1576 = vmatpush2.msra.mxu0 %v1033
        %1577 = vmatprep.subr.mxu0 %v1028
        %1578 = vmatpush2.msra.mxu0 %v1027
        %1579 = vmatprep.subr.mxu0 %v1022
        %1580 = vmatpush2.msra.mxu0 %v1021
        %1581 = vmatprep.subr.mxu0 %v1016
        %1582 = vmatpush2.msra.mxu0 %v1015
        %1583 = vmatprep.subr.mxu0 %v1010
        %1584 = vmatpush2.msra.mxu0 %v1009
        %1585 = vmatprep.subr.mxu0 %v1004
        %1586 = vmatpush2.msra.mxu0 %v1003
        %1587 = vmatprep.subr.mxu0 %v998
        %1588 = vmatpush2.msra.mxu0 %v997
        %1589 = vmatprep.subr.mxu0 %v992
        %1590 = vmatpush2.msra.mxu0 %v991
        %1591 = vmatprep.subr.mxu0 %v986
        %1592 = vmatpush2.msra.mxu0 %v985
        %1593 = vmatprep.subr.mxu0 %v980
        %1594 = vmatpush2.msra.mxu0 %v979
        %1595 = vmatprep.subr.mxu0 %v974
        %1596 = vmatpush2.msra.mxu0 %v973
        %1597 = vmatprep.subr.mxu0 %v968
        %1598 = vmatpush2.msra.mxu0 %v967
        %1599 = vmatprep.subr.mxu0 %v962
        %1600 = vmatpush2.msra.mxu0 %v961
        %1601 = vmatprep.subr.mxu0 %v956
        %1602 = vmatpush2.msra.mxu0 %v955
        %1603 = vmatprep.subr.mxu0 %v950
        %1604 = vmatpush2.msra.mxu0 %v949
        %1605 = vmatprep.subr.mxu0 %v944
        %1606 = vmatpush2.msra.mxu0 %v943
        %1607 = vmatprep.mubr.f32.mxu0 %v499
        %1608 = vmatmul.mubr.f32.gmra.mxu0 %v498
        %v1609 = vpop.f32.mrf.mxu0
        %v1610 = vadd.f32 %v1248, %v1609
        %v1611 = vpop.f32.mrf.mxu0
        %v1612 = vadd.f32 %v1252, %v1611
        %1613 = vdwg.mxu0
        %1614 = vmatprep.subr.mxu0 %v1130
        %1615 = vmatpush1.msra.mxu0 %v1129
        %1616 = vmatprep.subr.mxu0 %v1124
        %1617 = vmatpush1.msra.mxu0 %v1123
        %1618 = vmatprep.subr.mxu0 %v1118
        %1619 = vmatpush1.msra.mxu0 %v1117
        %1620 = vmatprep.subr.mxu0 %v1112
        %1621 = vmatpush1.msra.mxu0 %v1111
        %1622 = vmatprep.subr.mxu0 %v1106
        %1623 = vmatpush1.msra.mxu0 %v1105
        %1624 = vmatprep.subr.mxu0 %v1100
        %1625 = vmatpush1.msra.mxu0 %v1099
        %1626 = vmatprep.subr.mxu0 %v1094
        %1627 = vmatpush1.msra.mxu0 %v1093
        %1628 = vmatprep.subr.mxu0 %v1088
        %1629 = vmatpush1.msra.mxu0 %v1087
        %1630 = vmatprep.subr.mxu0 %v1082
        %1631 = vmatpush1.msra.mxu0 %v1081
        %1632 = vmatprep.subr.mxu0 %v1076
        %1633 = vmatpush1.msra.mxu0 %v1075
        %1634 = vmatprep.subr.mxu0 %v1070
        %1635 = vmatpush1.msra.mxu0 %v1069
        %1636 = vmatprep.subr.mxu0 %v1064
        %1637 = vmatpush1.msra.mxu0 %v1063
        %1638 = vmatprep.subr.mxu0 %v1058
        %1639 = vmatpush1.msra.mxu0 %v1057
        %1640 = vmatprep.subr.mxu0 %v1052
        %1641 = vmatpush1.msra.mxu0 %v1051
        %1642 = vmatprep.subr.mxu0 %v1046
        %1643 = vmatpush1.msra.mxu0 %v1045
        %1644 = vmatprep.subr.mxu0 %v1040
        %1645 = vmatpush1.msra.mxu0 %v1039
        %1646 = vmatprep.subr.mxu0 %v1226
        %1647 = vmatpush2.msra.mxu0 %v1225
        %1648 = vmatprep.subr.mxu0 %v1220
        %1649 = vmatpush2.msra.mxu0 %v1219
        %1650 = vmatprep.subr.mxu0 %v1214
        %1651 = vmatpush2.msra.mxu0 %v1213
        %1652 = vmatprep.subr.mxu0 %v1208
        %1653 = vmatpush2.msra.mxu0 %v1207
        %1654 = vmatprep.subr.mxu0 %v1202
        %1655 = vmatpush2.msra.mxu0 %v1201
        %1656 = vmatprep.subr.mxu0 %v1196
        %1657 = vmatpush2.msra.mxu0 %v1195
        %1658 = vmatprep.subr.mxu0 %v1190
        %1659 = vmatpush2.msra.mxu0 %v1189
        %1660 = vmatprep.subr.mxu0 %v1184
        %1661 = vmatpush2.msra.mxu0 %v1183
        %1662 = vmatprep.subr.mxu0 %v1178
        %1663 = vmatpush2.msra.mxu0 %v1177
        %1664 = vmatprep.subr.mxu0 %v1172
        %1665 = vmatpush2.msra.mxu0 %v1171
        %1666 = vmatprep.subr.mxu0 %v1166
        %1667 = vmatpush2.msra.mxu0 %v1165
        %1668 = vmatprep.subr.mxu0 %v1160
        %1669 = vmatpush2.msra.mxu0 %v1159
        %1670 = vmatprep.subr.mxu0 %v1154
        %1671 = vmatpush2.msra.mxu0 %v1153
        %1672 = vmatprep.subr.mxu0 %v1148
        %1673 = vmatpush2.msra.mxu0 %v1147
        %1674 = vmatprep.subr.mxu0 %v1142
        %1675 = vmatpush2.msra.mxu0 %v1141
        %1676 = vmatprep.subr.mxu0 %v1136
        %1677 = vmatpush2.msra.mxu0 %v1135
        %1678 = vmatprep.mubr.f32.mxu0 %v501
        %1679 = vmatmul.mubr.f32.gmra.mxu0 %v500
        %v1680 = vpop.f32.mrf.mxu0
        %v1681 = vadd.f32 %v1610, %v1680
        %v1682 = vpop.f32.mrf.mxu0
        %v1683 = vadd.f32 %v1612, %v1682
        %1684 = vdwg.mxu0
        %v1685 = vadd.f32 %v697, %v1397
        %v1686 = vadd.f32 %v699, %v1399
        %v1687 = vxor.u32 %v1685, 2147483648
        %v1688 = vxor.u32 %v1686, 2147483648
        %v1689 = vmul.f32 %v1687, 1.442695
        %v1690 = vpow.pop %v1689
        %v1691 = vmul.f32 %v1688, 1.442695
        %v1692 = vpow.pop %v1691
        %v1693 = vadd.f32 %v1690, 1.0
        %v1694 = vadd.f32 %v1692, 1.0
        %v1695 = vrcp.pop %v1693
        %v1696 = vmul.f32 1.0, %v1695
        %v1697 = vrcp.pop %v1694
        %v1698 = vmul.f32 1.0, %v1697
        %v1699 = vadd.f32 %v768, %v1539
        %v1700 = vadd.f32 %v770, %v1541
        %v1701 = vxor.u32 %v1699, 2147483648
        %v1702 = vxor.u32 %v1700, 2147483648
        %v1703 = vmul.f32 %v1701, 1.442695
        %v1704 = vpow.pop %v1703
        %v1705 = vmul.f32 %v1702, 1.442695
        %v1706 = vpow.pop %v1705
        %v1707 = vadd.f32 %v1704, 1.0
        %v1708 = vadd.f32 %v1706, 1.0
        %v1709 = vrcp.pop %v1707
        %v1710 = vmul.f32 1.0, %v1709
        %v1711 = vrcp.pop %v1708
        %v1712 = vmul.f32 1.0, %v1711
        %v1713 = vmul.f32 %v1696, %v1681
        %v1714 = vmul.f32 %v1698, %v1683
        %v1715 = vadd.f32 %v839, %v1713
        %v1716 = vadd.f32 %v841, %v1714
        %v1717 = vtanh.pop %v1715
        %v1718 = vtanh.pop %v1716
        %v1719 = vld [vmem:[%s408] sm:$0xff]
        %v1720 = vld [vmem:[%s408 + $0x8] sm:$0xff]
        %v1721 = vmul.f32 %v1710, %v1719
        %v1722 = vmul.f32 %v1712, %v1720
        %v1723 = vsub.f32 1.0, %v1710
        %v1724 = vsub.f32 1.0, %v1712
        %v1725 = vmul.f32 %v1723, %v1717
        %v1726 = vmul.f32 %v1724, %v1718
        %v1727 = vadd.f32 %v1721, %v1725
        %v1728 = vadd.f32 %v1722, %v1726
        %1729 = vst [vmem:[%s494] sm:$0xff] %v1727
        %1730 = vst [vmem:[%s494 + $0x8] sm:$0xff] %v1728
        %s1731 = sand.u32 %s229, 1
        %s1732 = scalar_lea.sflag [#allocation4], %s1731
        %s1733 = sand.u32 %s229, 1
        %s1734 = smul.addr %s1733, 16
        %s1735 = scalar_lea.vmem [#allocation12], %s1734
        // Predicated region
        $region77: #{tpu_custom_call.1} parent=47 // pred_check
          %p1736 = pneg %p239
        $region78: #{tpu_custom_call.1} parent=47 // pred_check_branch
          %1738 = sbr.rel (%p1736) target = $region80
        $region79: #{tpu_custom_call.1} parent=47 // pred_region
          %s1739 = smul.u32 2, %s28
          %s1741 = ssub.s32 256, 256
          %1742 = vsyncadd %s1732, %s1741
          %s1743 = smul.addr %s27, 4
          %s1744 = sadd.s32 %s1739, %s1743
          %s1745 = smul.addr %s1744, 128
          %s1746 = scalar_lea.hbm %s7, %s1745
          %s1748 = sshll.u32 %s1735, 4
          %s1749 = int_to_ptr.vmem [resolvable:$true] %s1748
          %1751 = dma.vmem_to_hbm [thread:$0]  %s1749, 256, %s1746, %s1732
        $region80: #{tpu_custom_call.1} parent=47 // pred_fallthru
          _
      $region48: #{tpu_custom_call.1} parent=5 // pred_fallthru
        _
      %p1752 = scmp.le.s32.totalorder 2, %s18
      // Predicated region
      $region81: #{tpu_custom_call.1} parent=5 // pred_check
        %p1753 = pneg %p1752
      $region82: #{tpu_custom_call.1} parent=5 // pred_check_branch
        %1755 = sbr.rel (%p1753) target = $region84
      $region83: #{tpu_custom_call.1} parent=5 // pred_region
        %s1756 = ssub.s32 %s18, 2
        // Predicated region
        $region85: #{tpu_custom_call.1} parent=83 // pred_check
          %p1757 = pneg %p245
        $region86: #{tpu_custom_call.1} parent=83 // pred_check_branch
          %1759 = sbr.rel (%p1757) target = $region88
        $region87: #{tpu_custom_call.1} parent=83 // pred_region
          %s1760 = sand.u32 %s230, 1
          %s1761 = scalar_lea.sflag [#allocation4], %s1760
          %s1762 = sand.u32 %s230, 1
          %s1763 = smul.addr %s1762, 16
          %s1764 = scalar_lea.vmem [#allocation12], %s1763
          %1765 = dma.done %s1761, 256
        $region88: #{tpu_custom_call.1} parent=83 // pred_fallthru
          _
      $region84: #{tpu_custom_call.1} parent=5 // pred_fallthru
        _
    $region6: #{tpu_custom_call.1} parent=1 // loop_footer
      %s22 = sadd.s32 1, %s18
    $region7: #{tpu_custom_call.1} parent=1 // loop_footer_branch
      %17 = sbr.rel target = $region3
    $region8: #{tpu_custom_call.1} parent=1 // loop_exit
      _
    %1766 = vsyncpa [#allocation3], 1
    %s1767 = scalar_lea.sflag [#allocation3], 1
    %1768 = vsyncpa %s1767, 1
    %1769 = vsyncpa [#allocation6], 1
    %1770 = vsyncpa [#allocation4], 1
    %s1771 = scalar_lea.sflag [#allocation4], 1
    %1772 = vsyncpa %s1771, 1

</llo_original>
